<compile_context>
chip_gen: v7x
topology: tpu7x:2x2x1
jax: 0.10.0
libtpu: 0.0.40
codegen_flags: <defaults>
</compile_context>

<pallas_src>
import jax
import jax.numpy as jnp
from jax import lax
from jax.experimental import pallas as pl
from jax.experimental.pallas import tpu as pltpu

# Small, module-consistent shapes.
B, S, D, H, F = 2, 8, 32, 4, 64
DK = D // H
EPS = 1e-6
NEG_INF = -1e9
SCALE = 1.0 / float(DK) ** 0.5

SEQS_PER_BLOCK = 2            # sequences handled per grid step
R = SEQS_PER_BLOCK * S        # rows (tokens) per grid step
NB = B // SEQS_PER_BLOCK      # grid size (1 at these shapes)
assert B % SEQS_PER_BLOCK == 0


def _layernorm_ref(x, a, b):
    # Annotated-Transformer LayerNorm: torch .std() is unbiased (ddof=1).
    mean = jnp.mean(x, axis=-1, keepdims=True)
    var = jnp.sum((x - mean) ** 2, axis=-1, keepdims=True) / (x.shape[-1] - 1)
    return a * (x - mean) / (jnp.sqrt(var) + EPS) + b


def _layernorm_kernel(x, a, b):
    # Exact divide (review correctness concern: no approx reciprocal in LN).
    mean = jnp.mean(x, axis=-1, keepdims=True)
    var = jnp.sum((x - mean) ** 2, axis=-1, keepdims=True) * (1.0 / (x.shape[-1] - 1))
    return a * (x - mean) / (jnp.sqrt(var) + EPS) + b


def encoder_layer_kernel(
    x_ref, bias_ref,
    a1_ref, b1_ref,
    wqkv_ref, bqkv_ref, wo_ref, bo_ref,
    a2_ref, b2_ref,
    w1_ref, bf1_ref, w2_ref, bf2_ref,
    o_ref,
):
    x = x_ref[...]                        # (R, D) f32: SEQS_PER_BLOCK sequences stacked
    bias = bias_ref[...]                  # (R, R) f32 additive attention bias (precomputed)

    # ---------- sublayer 0: residual + multi-head self-attention ----------
    xn = _layernorm_kernel(x, a1_ref[...], b1_ref[...])
    # Fused Q|K|V projection (weights already concatenated + Q pre-scaled by 1/sqrt(dk)).
    qkv = jnp.dot(xn.astype(jnp.bfloat16), wqkv_ref[...],
                  preferred_element_type=jnp.float32) + bqkv_ref[...]
    qkv16 = qkv.astype(jnp.bfloat16)
    wo16 = wo_ref[...]                    # (D, D) bf16

    attn = jnp.zeros((R, D), jnp.float32)
    for h in range(H):                    # static unrolled head loop
        q_h = qkv16[:, h * DK:(h + 1) * DK]                   # (R, DK), already scaled
        k_h = qkv16[:, D + h * DK:D + (h + 1) * DK]
        v_h = qkv16[:, 2 * D + h * DK:2 * D + (h + 1) * DK]
        # scores for all sequences of the block at once; cross-sequence /
        # padded keys are killed by the additive -1e9 bias.
        s = lax.dot_general(q_h, k_h, (((1,), (1,)), ((), ())),
                            preferred_element_type=jnp.float32) + bias
        s = s - jnp.max(s, axis=-1, keepdims=True)
        p = jnp.exp(s)
        p = p * pl.reciprocal(jnp.sum(p, axis=-1, keepdims=True), approx=True)
        # TODO(synk): attention-weight dropout omitted (eval mode / p=0).
        pv = jnp.dot(p.astype(jnp.bfloat16), v_h, preferred_element_type=jnp.float32)
        # Accumulate output projection per head (sublane-aligned wo row slice)
        # instead of lane-concatenating heads.
        attn = attn + jnp.dot(pv.astype(jnp.bfloat16), wo16[h * DK:(h + 1) * DK, :],
                              preferred_element_type=jnp.float32)
    x = x + attn + bo_ref[...]            # residual; dropout is identity

    # ---------- sublayer 1: residual + position-wise feed-forward ----------
    xn = _layernorm_kernel(x, a2_ref[...], b2_ref[...])
    h1 = jnp.maximum(
        jnp.dot(xn.astype(jnp.bfloat16), w1_ref[...],
                preferred_element_type=jnp.float32) + bf1_ref[...], 0.0)
    ff = jnp.dot(h1.astype(jnp.bfloat16), w2_ref[...],
                 preferred_element_type=jnp.float32) + bf2_ref[...]
    o_ref[...] = x + ff


def prepare_params(params):
    """One-time parameter prep (NOT per call): fuse Q|K|V, fold the 1/sqrt(dk)
    scale into the Q columns, and store matmul weights as bf16 MXU operands."""
    (a1, b1, wq, bq, wk, bk, wv, bv, wo, bo, a2, b2, w1, bf1, w2, bf2) = params
    wqkv = jnp.concatenate([wq * SCALE, wk, wv], axis=1).astype(jnp.bfloat16)  # (D, 3D)
    bqkv = jnp.concatenate([bq * SCALE, bk, bv], axis=1)                       # (1, 3D) f32
    return (a1, b1, wqkv, bqkv,
            wo.astype(jnp.bfloat16), bo, a2, b2,
            w1.astype(jnp.bfloat16), bf1, w2.astype(jnp.bfloat16), bf2)


def make_attention_bias(mask):
    """Per-block additive attention bias: block-diagonal over the sequences in a
    block (queries only attend within their own sequence) combined with the
    key-padding mask, with -1e9 on masked entries (== masked_fill(mask==0, -1e9))."""
    key_ok = (mask.reshape(NB, R) != 0.0)                    # (NB, R) per-key mask
    seq_id = jnp.arange(R) // S
    same_seq = seq_id[:, None] == seq_id[None, :]            # (R, R)
    valid = same_seq[None, :, :] & key_ok[:, None, :]        # (NB, R, R)
    bias = jnp.where(valid, jnp.float32(0.0), jnp.float32(NEG_INF))
    return bias.reshape(NB * R, R)


def encoder_layer(x, mask, kernel_params):
    (a1, b1, wqkv, bqkv, wo, bo, a2, b2, w1, bf1, w2, bf2) = kernel_params
    x_flat = x.reshape(B * S, D)
    bias = make_attention_bias(mask)

    vmem = pl.BlockSpec(memory_space=pltpu.MemorySpace.VMEM)   # whole-array resident params
    row_spec = pl.BlockSpec((R, D), lambda i: (i, 0))
    bias_spec = pl.BlockSpec((R, R), lambda i: (i, 0))

    inputs = (x_flat, bias, a1, b1, wqkv, bqkv, wo, bo, a2, b2, w1, bf1, w2, bf2)
    out = pl.pallas_call(
        encoder_layer_kernel,
        out_shape=jax.ShapeDtypeStruct((B * S, D), jnp.float32),
        grid=(NB,),
        in_specs=[row_spec, bias_spec] + [vmem] * 12,
        out_specs=row_spec,
        compiler_params=pltpu.CompilerParams(
            dimension_semantics=("parallel",)),   # shards blocks across TCs on v7x
    )(*inputs)
    return out.reshape(B, S, D)


def reference(x, mask, params):
    (a1, b1, wq, bq, wk, bk, wv, bv, wo, bo, a2, b2, w1, bf1, w2, bf2) = params
    xn = _layernorm_ref(x, a1, b1)
    q, k, v = xn @ wq + bq, xn @ wk + bk, xn @ wv + bv
    qh = q.reshape(B, S, H, DK).transpose(0, 2, 1, 3)
    kh = k.reshape(B, S, H, DK).transpose(0, 2, 1, 3)
    vh = v.reshape(B, S, H, DK).transpose(0, 2, 1, 3)
    scores = jnp.einsum("bhqd,bhkd->bhqk", qh, kh) / jnp.sqrt(jnp.float32(DK))
    scores = jnp.where(mask[:, None, :, :] == 0.0, NEG_INF, scores)
    p = jax.nn.softmax(scores, axis=-1)
    attn = jnp.einsum("bhqk,bhkd->bhqd", p, vh).transpose(0, 2, 1, 3).reshape(B, S, D)
    x = x + attn @ wo + bo
    xn = _layernorm_ref(x, a2, b2)
    return x + jnp.maximum(xn @ w1 + bf1, 0.0) @ w2 + bf2


def init_params(key):
    ks = jax.random.split(key, 8)
    scale = 0.1
    a1 = jnp.ones((1, D), jnp.float32)
    b1 = jnp.zeros((1, D), jnp.float32)
    wq = scale * jax.random.normal(ks[0], (D, D), jnp.float32)
    wk = scale * jax.random.normal(ks[1], (D, D), jnp.float32)
    wv = scale * jax.random.normal(ks[2], (D, D), jnp.float32)
    wo = scale * jax.random.normal(ks[3], (D, D), jnp.float32)
    bq = bk = bv = bo = jnp.zeros((1, D), jnp.float32)
    a2 = jnp.ones((1, D), jnp.float32)
    b2 = jnp.zeros((1, D), jnp.float32)
    w1 = scale * jax.random.normal(ks[4], (D, F), jnp.float32)
    bf1 = jnp.zeros((1, F), jnp.float32)
    w2 = scale * jax.random.normal(ks[5], (F, D), jnp.float32)
    bf2 = jnp.zeros((1, D), jnp.float32)
    return (a1, b1, wq, bq, wk, bk, wv, bv, wo, bo, a2, b2, w1, bf1, w2, bf2)


if __name__ == "__main__":
    key = jax.random.PRNGKey(0)
    kx, kp = jax.random.split(key)
    x = jax.random.normal(kx, (B, S, D), jnp.float32)
    # padding mask: batch 0 attends to all 8 positions, batch 1 to the first 5
    lengths = jnp.array([8, 5])
    mask = (jnp.arange(S)[None, None, :] < lengths[:, None, None]).astype(jnp.float32)
    params = init_params(kp)
    kernel_params = prepare_params(params)      # one-time weight packing (not per call)

    out = encoder_layer(x, mask, kernel_params)
    out = jax.block_until_ready(out)

    with jax.default_matmul_precision("highest"):
        ref = reference(x, mask, params)        # full-f32 reference (module semantics)
    assert out.shape == (B, S, D)
    # Tolerance sized for bf16 MXU operands (f32 accumulation) vs an f32 reference;
    # any structural bug (mask / head slicing / LN) produces O(0.1-1) errors.
    assert jnp.allclose(out, ref, rtol=2e-2, atol=2e-2), "mismatch vs reference"

    print("KERNEL_OK")
</pallas_src>

<mosaic_0001>
module attributes {stable_mosaic.version = 11 : i64} {
  func.func @encoder_layer_kernel(%arg0: i32, %arg1: memref<16x32xf32, #tpu.memory_space<vmem>>, %arg2: memref<16x16xf32, #tpu.memory_space<vmem>>, %arg3: memref<1x32xf32, #tpu.memory_space<vmem>>, %arg4: memref<1x32xf32, #tpu.memory_space<vmem>>, %arg5: memref<32x96xbf16, #tpu.memory_space<vmem>>, %arg6: memref<1x96xf32, #tpu.memory_space<vmem>>, %arg7: memref<32x32xbf16, #tpu.memory_space<vmem>>, %arg8: memref<1x32xf32, #tpu.memory_space<vmem>>, %arg9: memref<1x32xf32, #tpu.memory_space<vmem>>, %arg10: memref<1x32xf32, #tpu.memory_space<vmem>>, %arg11: memref<32x64xbf16, #tpu.memory_space<vmem>>, %arg12: memref<1x64xf32, #tpu.memory_space<vmem>>, %arg13: memref<64x32xbf16, #tpu.memory_space<vmem>>, %arg14: memref<1x32xf32, #tpu.memory_space<vmem>>, %arg15: memref<16x32xf32, #tpu.memory_space<vmem>>) attributes {dimension_semantics = [#tpu.dimension_semantics<parallel>], iteration_bounds = array<i64: 1>, scalar_prefetch = 0 : i64, scratch_operands = 0 : i64, tpu.core_type = #tpu.core_type<tc>, window_params = [{transform_indices = @transform_0, window_bounds = array<i64: 16, 32>}, {transform_indices = @transform_1, window_bounds = array<i64: 16, 16>}, {pipeline_mode = #tpu.pipeline_mode<synchronous>, transform_indices = @transform_2, window_bounds = array<i64: 1, 32>}, {pipeline_mode = #tpu.pipeline_mode<synchronous>, transform_indices = @transform_3, window_bounds = array<i64: 1, 32>}, {pipeline_mode = #tpu.pipeline_mode<synchronous>, transform_indices = @transform_4, window_bounds = array<i64: 32, 96>}, {pipeline_mode = #tpu.pipeline_mode<synchronous>, transform_indices = @transform_5, window_bounds = array<i64: 1, 96>}, {pipeline_mode = #tpu.pipeline_mode<synchronous>, transform_indices = @transform_6, window_bounds = array<i64: 32, 32>}, {pipeline_mode = #tpu.pipeline_mode<synchronous>, transform_indices = @transform_7, window_bounds = array<i64: 1, 32>}, {pipeline_mode = #tpu.pipeline_mode<synchronous>, transform_indices = @transform_8, window_bounds = array<i64: 1, 32>}, {pipeline_mode = #tpu.pipeline_mode<synchronous>, transform_indices = @transform_9, window_bounds = array<i64: 1, 32>}, {pipeline_mode = #tpu.pipeline_mode<synchronous>, transform_indices = @transform_10, window_bounds = array<i64: 32, 64>}, {pipeline_mode = #tpu.pipeline_mode<synchronous>, transform_indices = @transform_11, window_bounds = array<i64: 1, 64>}, {pipeline_mode = #tpu.pipeline_mode<synchronous>, transform_indices = @transform_12, window_bounds = array<i64: 64, 32>}, {pipeline_mode = #tpu.pipeline_mode<synchronous>, transform_indices = @transform_13, window_bounds = array<i64: 1, 32>}, {transform_indices = @transform_14, window_bounds = array<i64: 16, 32>}]} {
    %c0 = arith.constant 0 : index
    %c0_0 = arith.constant 0 : index
    %0 = vector.load %arg1[%c0, %c0_0] : memref<16x32xf32, #tpu.memory_space<vmem>>, vector<16x32xf32>
    %c0_1 = arith.constant 0 : index
    %c0_2 = arith.constant 0 : index
    %1 = vector.load %arg2[%c0_1, %c0_2] : memref<16x16xf32, #tpu.memory_space<vmem>>, vector<16x16xf32>
    %c0_3 = arith.constant 0 : index
    %c0_4 = arith.constant 0 : index
    %2 = vector.load %arg3[%c0_3, %c0_4] : memref<1x32xf32, #tpu.memory_space<vmem>>, vector<1x32xf32>
    %c0_5 = arith.constant 0 : index
    %c0_6 = arith.constant 0 : index
    %3 = vector.load %arg4[%c0_5, %c0_6] : memref<1x32xf32, #tpu.memory_space<vmem>>, vector<1x32xf32>
    %cst = arith.constant dense<0.000000e+00> : vector<16xf32>
    %4 = vector.multi_reduction <add>, %0, %cst [1] : vector<16x32xf32> to vector<16xf32>
    %5 = vector.shape_cast %4 : vector<16xf32> to vector<16x1xf32>
    %cst_7 = arith.constant 3.200000e+01 : f32
    %6 = vector.broadcast %cst_7 : f32 to vector<16x1xf32>
    %7 = arith.divf %5, %6 : vector<16x1xf32>
    %8 = vector.broadcast %7 : vector<16x1xf32> to vector<16x32xf32>
    %9 = arith.subf %0, %8 : vector<16x32xf32>
    %10 = arith.mulf %9, %9 : vector<16x32xf32>
    %cst_8 = arith.constant dense<0.000000e+00> : vector<16xf32>
    %11 = vector.multi_reduction <add>, %10, %cst_8 [1] : vector<16x32xf32> to vector<16xf32>
    %12 = vector.shape_cast %11 : vector<16xf32> to vector<16x1xf32>
    %cst_9 = arith.constant 0.0322580636 : f32
    %13 = vector.broadcast %cst_9 : f32 to vector<16x1xf32>
    %14 = arith.mulf %12, %13 : vector<16x1xf32>
    %15 = vector.broadcast %7 : vector<16x1xf32> to vector<16x32xf32>
    %16 = arith.subf %0, %15 : vector<16x32xf32>
    %17 = vector.broadcast %2 : vector<1x32xf32> to vector<16x32xf32>
    %18 = arith.mulf %17, %16 : vector<16x32xf32>
    %19 = math.sqrt %14 : vector<16x1xf32>
    %cst_10 = arith.constant 9.99999997E-7 : f32
    %20 = vector.broadcast %cst_10 : f32 to vector<16x1xf32>
    %21 = arith.addf %19, %20 : vector<16x1xf32>
    %22 = vector.broadcast %21 : vector<16x1xf32> to vector<16x32xf32>
    %23 = arith.divf %18, %22 : vector<16x32xf32>
    %24 = vector.broadcast %3 : vector<1x32xf32> to vector<16x32xf32>
    %25 = arith.addf %23, %24 : vector<16x32xf32>
    %26 = arith.truncf %25 : vector<16x32xf32> to vector<16x32xbf16>
    %c0_11 = arith.constant 0 : index
    %c0_12 = arith.constant 0 : index
    %27 = vector.load %arg5[%c0_11, %c0_12] : memref<32x96xbf16, #tpu.memory_space<vmem>>, vector<32x96xbf16>
    %cst_13 = arith.constant dense<0.000000e+00> : vector<16x96xf32>
    %28 = tpu.matmul %26, %27, %cst_13 {dimension_numbers = #tpu.dot_dimension_numbers<[1], [0], [0], [1], [0, 0, 1, 1], [], []>} : vector<16x32xbf16>, vector<32x96xbf16>, vector<16x96xf32> -> vector<16x96xf32>
    %c0_14 = arith.constant 0 : index
    %c0_15 = arith.constant 0 : index
    %29 = vector.load %arg6[%c0_14, %c0_15] : memref<1x96xf32, #tpu.memory_space<vmem>>, vector<1x96xf32>
    %30 = vector.broadcast %29 : vector<1x96xf32> to vector<16x96xf32>
    %31 = arith.addf %28, %30 : vector<16x96xf32>
    %32 = arith.truncf %31 : vector<16x96xf32> to vector<16x96xbf16>
    %c0_16 = arith.constant 0 : index
    %c0_17 = arith.constant 0 : index
    %33 = vector.load %arg7[%c0_16, %c0_17] : memref<32x32xbf16, #tpu.memory_space<vmem>>, vector<32x32xbf16>
    %cst_18 = arith.constant 0.000000e+00 : f32
    %34 = vector.broadcast %cst_18 : f32 to vector<16x32xf32>
    %35 = vector.extract_strided_slice %32 {offsets = [0, 0], sizes = [16, 8], strides = [1, 1]} : vector<16x96xbf16> to vector<16x8xbf16>
    %36 = vector.extract_strided_slice %32 {offsets = [0, 32], sizes = [16, 8], strides = [1, 1]} : vector<16x96xbf16> to vector<16x8xbf16>
    %37 = vector.extract_strided_slice %32 {offsets = [0, 64], sizes = [16, 8], strides = [1, 1]} : vector<16x96xbf16> to vector<16x8xbf16>
    %cst_19 = arith.constant dense<0.000000e+00> : vector<16x16xf32>
    %38 = tpu.matmul %35, %36, %cst_19 {dimension_numbers = #tpu.dot_dimension_numbers<[1], [1], [0], [0], [0, 0, 1, 0], [], []>} : vector<16x8xbf16>, vector<16x8xbf16>, vector<16x16xf32> -> vector<16x16xf32>
    %39 = arith.addf %38, %1 : vector<16x16xf32>
    %cst_20 = arith.constant dense<0xFF800000> : vector<16xf32>
    %40 = vector.multi_reduction <maximumf>, %39, %cst_20 [1] : vector<16x16xf32> to vector<16xf32>
    %41 = vector.shape_cast %40 : vector<16xf32> to vector<16x1xf32>
    %42 = vector.broadcast %41 : vector<16x1xf32> to vector<16x16xf32>
    %43 = arith.subf %39, %42 : vector<16x16xf32>
    %44 = math.exp %43 : vector<16x16xf32>
    %cst_21 = arith.constant dense<0.000000e+00> : vector<16xf32>
    %45 = vector.multi_reduction <add>, %44, %cst_21 [1] : vector<16x16xf32> to vector<16xf32>
    %46 = vector.shape_cast %45 : vector<16xf32> to vector<16x1xf32>
    %47 = tpu.reciprocal %46 {approx = true} : vector<16x1xf32> -> vector<16x1xf32>
    %48 = vector.broadcast %47 : vector<16x1xf32> to vector<16x16xf32>
    %49 = arith.mulf %44, %48 : vector<16x16xf32>
    %50 = arith.truncf %49 : vector<16x16xf32> to vector<16x16xbf16>
    %cst_22 = arith.constant dense<0.000000e+00> : vector<16x8xf32>
    %51 = tpu.matmul %50, %37, %cst_22 {dimension_numbers = #tpu.dot_dimension_numbers<[1], [0], [0], [1], [0, 0, 1, 1], [], []>} : vector<16x16xbf16>, vector<16x8xbf16>, vector<16x8xf32> -> vector<16x8xf32>
    %52 = arith.truncf %51 : vector<16x8xf32> to vector<16x8xbf16>
    %53 = vector.extract_strided_slice %33 {offsets = [0, 0], sizes = [8, 32], strides = [1, 1]} : vector<32x32xbf16> to vector<8x32xbf16>
    %cst_23 = arith.constant dense<0.000000e+00> : vector<16x32xf32>
    %54 = tpu.matmul %52, %53, %cst_23 {dimension_numbers = #tpu.dot_dimension_numbers<[1], [0], [0], [1], [0, 0, 1, 1], [], []>} : vector<16x8xbf16>, vector<8x32xbf16>, vector<16x32xf32> -> vector<16x32xf32>
    %55 = arith.addf %34, %54 : vector<16x32xf32>
    %56 = vector.extract_strided_slice %32 {offsets = [0, 8], sizes = [16, 8], strides = [1, 1]} : vector<16x96xbf16> to vector<16x8xbf16>
    %57 = vector.extract_strided_slice %32 {offsets = [0, 40], sizes = [16, 8], strides = [1, 1]} : vector<16x96xbf16> to vector<16x8xbf16>
    %58 = vector.extract_strided_slice %32 {offsets = [0, 72], sizes = [16, 8], strides = [1, 1]} : vector<16x96xbf16> to vector<16x8xbf16>
    %cst_24 = arith.constant dense<0.000000e+00> : vector<16x16xf32>
    %59 = tpu.matmul %56, %57, %cst_24 {dimension_numbers = #tpu.dot_dimension_numbers<[1], [1], [0], [0], [0, 0, 1, 0], [], []>} : vector<16x8xbf16>, vector<16x8xbf16>, vector<16x16xf32> -> vector<16x16xf32>
    %60 = arith.addf %59, %1 : vector<16x16xf32>
    %cst_25 = arith.constant dense<0xFF800000> : vector<16xf32>
    %61 = vector.multi_reduction <maximumf>, %60, %cst_25 [1] : vector<16x16xf32> to vector<16xf32>
    %62 = vector.shape_cast %61 : vector<16xf32> to vector<16x1xf32>
    %63 = vector.broadcast %62 : vector<16x1xf32> to vector<16x16xf32>
    %64 = arith.subf %60, %63 : vector<16x16xf32>
    %65 = math.exp %64 : vector<16x16xf32>
    %cst_26 = arith.constant dense<0.000000e+00> : vector<16xf32>
    %66 = vector.multi_reduction <add>, %65, %cst_26 [1] : vector<16x16xf32> to vector<16xf32>
    %67 = vector.shape_cast %66 : vector<16xf32> to vector<16x1xf32>
    %68 = tpu.reciprocal %67 {approx = true} : vector<16x1xf32> -> vector<16x1xf32>
    %69 = vector.broadcast %68 : vector<16x1xf32> to vector<16x16xf32>
    %70 = arith.mulf %65, %69 : vector<16x16xf32>
    %71 = arith.truncf %70 : vector<16x16xf32> to vector<16x16xbf16>
    %cst_27 = arith.constant dense<0.000000e+00> : vector<16x8xf32>
    %72 = tpu.matmul %71, %58, %cst_27 {dimension_numbers = #tpu.dot_dimension_numbers<[1], [0], [0], [1], [0, 0, 1, 1], [], []>} : vector<16x16xbf16>, vector<16x8xbf16>, vector<16x8xf32> -> vector<16x8xf32>
    %73 = arith.truncf %72 : vector<16x8xf32> to vector<16x8xbf16>
    %74 = vector.extract_strided_slice %33 {offsets = [8, 0], sizes = [8, 32], strides = [1, 1]} : vector<32x32xbf16> to vector<8x32xbf16>
    %cst_28 = arith.constant dense<0.000000e+00> : vector<16x32xf32>
    %75 = tpu.matmul %73, %74, %cst_28 {dimension_numbers = #tpu.dot_dimension_numbers<[1], [0], [0], [1], [0, 0, 1, 1], [], []>} : vector<16x8xbf16>, vector<8x32xbf16>, vector<16x32xf32> -> vector<16x32xf32>
    %76 = arith.addf %55, %75 : vector<16x32xf32>
    %77 = vector.extract_strided_slice %32 {offsets = [0, 16], sizes = [16, 8], strides = [1, 1]} : vector<16x96xbf16> to vector<16x8xbf16>
    %78 = vector.extract_strided_slice %32 {offsets = [0, 48], sizes = [16, 8], strides = [1, 1]} : vector<16x96xbf16> to vector<16x8xbf16>
    %79 = vector.extract_strided_slice %32 {offsets = [0, 80], sizes = [16, 8], strides = [1, 1]} : vector<16x96xbf16> to vector<16x8xbf16>
    %cst_29 = arith.constant dense<0.000000e+00> : vector<16x16xf32>
    %80 = tpu.matmul %77, %78, %cst_29 {dimension_numbers = #tpu.dot_dimension_numbers<[1], [1], [0], [0], [0, 0, 1, 0], [], []>} : vector<16x8xbf16>, vector<16x8xbf16>, vector<16x16xf32> -> vector<16x16xf32>
    %81 = arith.addf %80, %1 : vector<16x16xf32>
    %cst_30 = arith.constant dense<0xFF800000> : vector<16xf32>
    %82 = vector.multi_reduction <maximumf>, %81, %cst_30 [1] : vector<16x16xf32> to vector<16xf32>
    %83 = vector.shape_cast %82 : vector<16xf32> to vector<16x1xf32>
    %84 = vector.broadcast %83 : vector<16x1xf32> to vector<16x16xf32>
    %85 = arith.subf %81, %84 : vector<16x16xf32>
    %86 = math.exp %85 : vector<16x16xf32>
    %cst_31 = arith.constant dense<0.000000e+00> : vector<16xf32>
    %87 = vector.multi_reduction <add>, %86, %cst_31 [1] : vector<16x16xf32> to vector<16xf32>
    %88 = vector.shape_cast %87 : vector<16xf32> to vector<16x1xf32>
    %89 = tpu.reciprocal %88 {approx = true} : vector<16x1xf32> -> vector<16x1xf32>
    %90 = vector.broadcast %89 : vector<16x1xf32> to vector<16x16xf32>
    %91 = arith.mulf %86, %90 : vector<16x16xf32>
    %92 = arith.truncf %91 : vector<16x16xf32> to vector<16x16xbf16>
    %cst_32 = arith.constant dense<0.000000e+00> : vector<16x8xf32>
    %93 = tpu.matmul %92, %79, %cst_32 {dimension_numbers = #tpu.dot_dimension_numbers<[1], [0], [0], [1], [0, 0, 1, 1], [], []>} : vector<16x16xbf16>, vector<16x8xbf16>, vector<16x8xf32> -> vector<16x8xf32>
    %94 = arith.truncf %93 : vector<16x8xf32> to vector<16x8xbf16>
    %95 = vector.extract_strided_slice %33 {offsets = [16, 0], sizes = [8, 32], strides = [1, 1]} : vector<32x32xbf16> to vector<8x32xbf16>
    %cst_33 = arith.constant dense<0.000000e+00> : vector<16x32xf32>
    %96 = tpu.matmul %94, %95, %cst_33 {dimension_numbers = #tpu.dot_dimension_numbers<[1], [0], [0], [1], [0, 0, 1, 1], [], []>} : vector<16x8xbf16>, vector<8x32xbf16>, vector<16x32xf32> -> vector<16x32xf32>
    %97 = arith.addf %76, %96 : vector<16x32xf32>
    %98 = vector.extract_strided_slice %32 {offsets = [0, 24], sizes = [16, 8], strides = [1, 1]} : vector<16x96xbf16> to vector<16x8xbf16>
    %99 = vector.extract_strided_slice %32 {offsets = [0, 56], sizes = [16, 8], strides = [1, 1]} : vector<16x96xbf16> to vector<16x8xbf16>
    %100 = vector.extract_strided_slice %32 {offsets = [0, 88], sizes = [16, 8], strides = [1, 1]} : vector<16x96xbf16> to vector<16x8xbf16>
    %cst_34 = arith.constant dense<0.000000e+00> : vector<16x16xf32>
    %101 = tpu.matmul %98, %99, %cst_34 {dimension_numbers = #tpu.dot_dimension_numbers<[1], [1], [0], [0], [0, 0, 1, 0], [], []>} : vector<16x8xbf16>, vector<16x8xbf16>, vector<16x16xf32> -> vector<16x16xf32>
    %102 = arith.addf %101, %1 : vector<16x16xf32>
    %cst_35 = arith.constant dense<0xFF800000> : vector<16xf32>
    %103 = vector.multi_reduction <maximumf>, %102, %cst_35 [1] : vector<16x16xf32> to vector<16xf32>
    %104 = vector.shape_cast %103 : vector<16xf32> to vector<16x1xf32>
    %105 = vector.broadcast %104 : vector<16x1xf32> to vector<16x16xf32>
    %106 = arith.subf %102, %105 : vector<16x16xf32>
    %107 = math.exp %106 : vector<16x16xf32>
    %cst_36 = arith.constant dense<0.000000e+00> : vector<16xf32>
    %108 = vector.multi_reduction <add>, %107, %cst_36 [1] : vector<16x16xf32> to vector<16xf32>
    %109 = vector.shape_cast %108 : vector<16xf32> to vector<16x1xf32>
    %110 = tpu.reciprocal %109 {approx = true} : vector<16x1xf32> -> vector<16x1xf32>
    %111 = vector.broadcast %110 : vector<16x1xf32> to vector<16x16xf32>
    %112 = arith.mulf %107, %111 : vector<16x16xf32>
    %113 = arith.truncf %112 : vector<16x16xf32> to vector<16x16xbf16>
    %cst_37 = arith.constant dense<0.000000e+00> : vector<16x8xf32>
    %114 = tpu.matmul %113, %100, %cst_37 {dimension_numbers = #tpu.dot_dimension_numbers<[1], [0], [0], [1], [0, 0, 1, 1], [], []>} : vector<16x16xbf16>, vector<16x8xbf16>, vector<16x8xf32> -> vector<16x8xf32>
    %115 = arith.truncf %114 : vector<16x8xf32> to vector<16x8xbf16>
    %116 = vector.extract_strided_slice %33 {offsets = [24, 0], sizes = [8, 32], strides = [1, 1]} : vector<32x32xbf16> to vector<8x32xbf16>
    %cst_38 = arith.constant dense<0.000000e+00> : vector<16x32xf32>
    %117 = tpu.matmul %115, %116, %cst_38 {dimension_numbers = #tpu.dot_dimension_numbers<[1], [0], [0], [1], [0, 0, 1, 1], [], []>} : vector<16x8xbf16>, vector<8x32xbf16>, vector<16x32xf32> -> vector<16x32xf32>
    %118 = arith.addf %97, %117 : vector<16x32xf32>
    %119 = arith.addf %0, %118 : vector<16x32xf32>
    %c0_39 = arith.constant 0 : index
    %c0_40 = arith.constant 0 : index
    %120 = vector.load %arg8[%c0_39, %c0_40] : memref<1x32xf32, #tpu.memory_space<vmem>>, vector<1x32xf32>
    %121 = vector.broadcast %120 : vector<1x32xf32> to vector<16x32xf32>
    %122 = arith.addf %119, %121 : vector<16x32xf32>
    %c0_41 = arith.constant 0 : index
    %c0_42 = arith.constant 0 : index
    %123 = vector.load %arg9[%c0_41, %c0_42] : memref<1x32xf32, #tpu.memory_space<vmem>>, vector<1x32xf32>
    %c0_43 = arith.constant 0 : index
    %c0_44 = arith.constant 0 : index
    %124 = vector.load %arg10[%c0_43, %c0_44] : memref<1x32xf32, #tpu.memory_space<vmem>>, vector<1x32xf32>
    %cst_45 = arith.constant dense<0.000000e+00> : vector<16xf32>
    %125 = vector.multi_reduction <add>, %122, %cst_45 [1] : vector<16x32xf32> to vector<16xf32>
    %126 = vector.shape_cast %125 : vector<16xf32> to vector<16x1xf32>
    %cst_46 = arith.constant 3.200000e+01 : f32
    %127 = vector.broadcast %cst_46 : f32 to vector<16x1xf32>
    %128 = arith.divf %126, %127 : vector<16x1xf32>
    %129 = vector.broadcast %128 : vector<16x1xf32> to vector<16x32xf32>
    %130 = arith.subf %122, %129 : vector<16x32xf32>
    %131 = arith.mulf %130, %130 : vector<16x32xf32>
    %cst_47 = arith.constant dense<0.000000e+00> : vector<16xf32>
    %132 = vector.multi_reduction <add>, %131, %cst_47 [1] : vector<16x32xf32> to vector<16xf32>
    %133 = vector.shape_cast %132 : vector<16xf32> to vector<16x1xf32>
    %cst_48 = arith.constant 0.0322580636 : f32
    %134 = vector.broadcast %cst_48 : f32 to vector<16x1xf32>
    %135 = arith.mulf %133, %134 : vector<16x1xf32>
    %136 = vector.broadcast %128 : vector<16x1xf32> to vector<16x32xf32>
    %137 = arith.subf %122, %136 : vector<16x32xf32>
    %138 = vector.broadcast %123 : vector<1x32xf32> to vector<16x32xf32>
    %139 = arith.mulf %138, %137 : vector<16x32xf32>
    %140 = math.sqrt %135 : vector<16x1xf32>
    %cst_49 = arith.constant 9.99999997E-7 : f32
    %141 = vector.broadcast %cst_49 : f32 to vector<16x1xf32>
    %142 = arith.addf %140, %141 : vector<16x1xf32>
    %143 = vector.broadcast %142 : vector<16x1xf32> to vector<16x32xf32>
    %144 = arith.divf %139, %143 : vector<16x32xf32>
    %145 = vector.broadcast %124 : vector<1x32xf32> to vector<16x32xf32>
    %146 = arith.addf %144, %145 : vector<16x32xf32>
    %147 = arith.truncf %146 : vector<16x32xf32> to vector<16x32xbf16>
    %c0_50 = arith.constant 0 : index
    %c0_51 = arith.constant 0 : index
    %148 = vector.load %arg11[%c0_50, %c0_51] : memref<32x64xbf16, #tpu.memory_space<vmem>>, vector<32x64xbf16>
    %cst_52 = arith.constant dense<0.000000e+00> : vector<16x64xf32>
    %149 = tpu.matmul %147, %148, %cst_52 {dimension_numbers = #tpu.dot_dimension_numbers<[1], [0], [0], [1], [0, 0, 1, 1], [], []>} : vector<16x32xbf16>, vector<32x64xbf16>, vector<16x64xf32> -> vector<16x64xf32>
    %c0_53 = arith.constant 0 : index
    %c0_54 = arith.constant 0 : index
    %150 = vector.load %arg12[%c0_53, %c0_54] : memref<1x64xf32, #tpu.memory_space<vmem>>, vector<1x64xf32>
    %151 = vector.broadcast %150 : vector<1x64xf32> to vector<16x64xf32>
    %152 = arith.addf %149, %151 : vector<16x64xf32>
    %cst_55 = arith.constant 0.000000e+00 : f32
    %153 = vector.broadcast %cst_55 : f32 to vector<16x64xf32>
    %154 = arith.maximumf %152, %153 : vector<16x64xf32>
    %155 = arith.truncf %154 : vector<16x64xf32> to vector<16x64xbf16>
    %c0_56 = arith.constant 0 : index
    %c0_57 = arith.constant 0 : index
    %156 = vector.load %arg13[%c0_56, %c0_57] : memref<64x32xbf16, #tpu.memory_space<vmem>>, vector<64x32xbf16>
    %cst_58 = arith.constant dense<0.000000e+00> : vector<16x32xf32>
    %157 = tpu.matmul %155, %156, %cst_58 {dimension_numbers = #tpu.dot_dimension_numbers<[1], [0], [0], [1], [0, 0, 1, 1], [], []>} : vector<16x64xbf16>, vector<64x32xbf16>, vector<16x32xf32> -> vector<16x32xf32>
    %c0_59 = arith.constant 0 : index
    %c0_60 = arith.constant 0 : index
    %158 = vector.load %arg14[%c0_59, %c0_60] : memref<1x32xf32, #tpu.memory_space<vmem>>, vector<1x32xf32>
    %159 = vector.broadcast %158 : vector<1x32xf32> to vector<16x32xf32>
    %160 = arith.addf %157, %159 : vector<16x32xf32>
    %161 = arith.addf %122, %160 : vector<16x32xf32>
    %c0_61 = arith.constant 0 : index
    %c0_62 = arith.constant 0 : index
    %162 = vector.load %arg15[%c0_61, %c0_62] : memref<16x32xf32, #tpu.memory_space<vmem>>, vector<16x32xf32>
    tpu.vector_store %arg15[%c0_61, %c0_62], %161 {strides = array<i32>} : memref<16x32xf32, #tpu.memory_space<vmem>>, vector<16x32xf32>,
    return
  }
  func.func @transform_0(%arg0: i32) -> (i32, i32) {
    %c0_i32 = arith.constant 0 : i32
    %c0_i32_0 = arith.constant 0 : i32
    return %arg0, %c0_i32 : i32, i32
  }
  func.func @transform_1(%arg0: i32) -> (i32, i32) {
    %c0_i32 = arith.constant 0 : i32
    %c0_i32_0 = arith.constant 0 : i32
    return %arg0, %c0_i32 : i32, i32
  }
  func.func @transform_2(%arg0: i32) -> (i32, i32) {
    %c0_i32 = arith.constant 0 : i32
    %c0_i32_0 = arith.constant 0 : i32
    %c0_i32_1 = arith.constant 0 : i32
    return %c0_i32, %c0_i32_0 : i32, i32
  }
  func.func @transform_3(%arg0: i32) -> (i32, i32) {
    %c0_i32 = arith.constant 0 : i32
    %c0_i32_0 = arith.constant 0 : i32
    %c0_i32_1 = arith.constant 0 : i32
    return %c0_i32, %c0_i32_0 : i32, i32
  }
  func.func @transform_4(%arg0: i32) -> (i32, i32) {
    %c0_i32 = arith.constant 0 : i32
    %c0_i32_0 = arith.constant 0 : i32
    %c0_i32_1 = arith.constant 0 : i32
    return %c0_i32, %c0_i32_0 : i32, i32
  }
  func.func @transform_5(%arg0: i32) -> (i32, i32) {
    %c0_i32 = arith.constant 0 : i32
    %c0_i32_0 = arith.constant 0 : i32
    %c0_i32_1 = arith.constant 0 : i32
    return %c0_i32, %c0_i32_0 : i32, i32
  }
  func.func @transform_6(%arg0: i32) -> (i32, i32) {
    %c0_i32 = arith.constant 0 : i32
    %c0_i32_0 = arith.constant 0 : i32
    %c0_i32_1 = arith.constant 0 : i32
    return %c0_i32, %c0_i32_0 : i32, i32
  }
  func.func @transform_7(%arg0: i32) -> (i32, i32) {
    %c0_i32 = arith.constant 0 : i32
    %c0_i32_0 = arith.constant 0 : i32
    %c0_i32_1 = arith.constant 0 : i32
    return %c0_i32, %c0_i32_0 : i32, i32
  }
  func.func @transform_8(%arg0: i32) -> (i32, i32) {
    %c0_i32 = arith.constant 0 : i32
    %c0_i32_0 = arith.constant 0 : i32
    %c0_i32_1 = arith.constant 0 : i32
    return %c0_i32, %c0_i32_0 : i32, i32
  }
  func.func @transform_9(%arg0: i32) -> (i32, i32) {
    %c0_i32 = arith.constant 0 : i32
    %c0_i32_0 = arith.constant 0 : i32
    %c0_i32_1 = arith.constant 0 : i32
    return %c0_i32, %c0_i32_0 : i32, i32
  }
  func.func @transform_10(%arg0: i32) -> (i32, i32) {
    %c0_i32 = arith.constant 0 : i32
    %c0_i32_0 = arith.constant 0 : i32
    %c0_i32_1 = arith.constant 0 : i32
    return %c0_i32, %c0_i32_0 : i32, i32
  }
  func.func @transform_11(%arg0: i32) -> (i32, i32) {
    %c0_i32 = arith.constant 0 : i32
    %c0_i32_0 = arith.constant 0 : i32
    %c0_i32_1 = arith.constant 0 : i32
    return %c0_i32, %c0_i32_0 : i32, i32
  }
  func.func @transform_12(%arg0: i32) -> (i32, i32) {
    %c0_i32 = arith.constant 0 : i32
    %c0_i32_0 = arith.constant 0 : i32
    %c0_i32_1 = arith.constant 0 : i32
    return %c0_i32, %c0_i32_0 : i32, i32
  }
  func.func @transform_13(%arg0: i32) -> (i32, i32) {
    %c0_i32 = arith.constant 0 : i32
    %c0_i32_0 = arith.constant 0 : i32
    %c0_i32_1 = arith.constant 0 : i32
    return %c0_i32, %c0_i32_0 : i32, i32
  }
  func.func @transform_14(%arg0: i32) -> (i32, i32) {
    %c0_i32 = arith.constant 0 : i32
    %c0_i32_0 = arith.constant 0 : i32
    return %arg0, %c0_i32 : i32, i32
  }
}

</mosaic_0001>

<llo_original>
// kernel: tpu_custom_call.1
$region0: #{tpu_custom_call.1}
  #allocation0 [shape = 'u32[]', space=smem, size = 0x4, offset = 0x4, fixed_abs, tag = 'smem constant byte address 0x4 - core index']
  #allocation1 [shape = 'u32[144,128]{1,0:T(1,128)}', space=vmem, size = 0x12000, scoped, tag = 'internal scratch']
  %s0 = inlined_call_operand.vmem [shape: f32[16,32], index: 0, kind: input, shape index: {}]
  %s1 = inlined_call_operand.vmem [shape: f32[16,16], index: 1, kind: input, shape index: {}]
  %s2 = inlined_call_operand.vmem [shape: f32[1,32], index: 2, kind: input, shape index: {}]
  %s3 = inlined_call_operand.vmem [shape: f32[1,32], index: 3, kind: input, shape index: {}]
  %s4 = inlined_call_operand.vmem [shape: bf16[32,96], index: 4, kind: input, shape index: {}]
  %s5 = inlined_call_operand.hbm [shape: f32[1,96], index: 5, kind: input, shape index: {}]
  %s6 = inlined_call_operand.hbm [shape: bf16[32,32], index: 6, kind: input, shape index: {}]
  %s7 = inlined_call_operand.hbm [shape: f32[1,32], index: 7, kind: input, shape index: {}]
  %s8 = inlined_call_operand.hbm [shape: f32[1,32], index: 8, kind: input, shape index: {}]
  %s9 = inlined_call_operand.hbm [shape: f32[1,32], index: 9, kind: input, shape index: {}]
  %s10 = inlined_call_operand.vmem [shape: bf16[32,64], index: 10, kind: input, shape index: {}]
  %s11 = inlined_call_operand.vmem [shape: f32[1,64], index: 11, kind: input, shape index: {}]
  %s12 = inlined_call_operand.vmem [shape: bf16[64,32], index: 12, kind: input, shape index: {}]
  %s13 = inlined_call_operand.vmem [shape: f32[1,32], index: 13, kind: input, shape index: {}]
  %s14 = inlined_call_operand.hbm [shape: f32[16,32], index: 14, kind: output, shape index: {}]
  %s15 = sld [smem:[#allocation0]]
  $region86: #{tpu_custom_call.1} parent=0
    _
  %s17 = ssub.s32 1, %s15
  %s18 = scalar_select 0, %s17, %s15
  $region1: #{tpu_custom_call.1} parent=0
    #allocation2 [shape = 'u8[512]{0}', space=vmem, size = 0x400, scoped, tag = 'input window, operand 5, single buffered']
    #allocation3 [shape = 's32[1]{0}', space=sflag, size = 0x4, scoped, tag = 'scoped memory for tpu_custom_call.1']
    #allocation4 [shape = 's32[1]{0}', space=sflag, size = 0x4, scoped, tag = 'scoped memory for tpu_custom_call.1']
    #allocation5 [shape = 'u8[8192]{0}', space=vmem, size = 0x2000, scoped, tag = 'input window, operand 6, single buffered']
    #allocation6 [shape = 's32[1]{0}', space=sflag, size = 0x4, scoped, tag = 'scoped memory for tpu_custom_call.1']
    #allocation7 [shape = 'u8[512]{0}', space=vmem, size = 0x400, scoped, tag = 'input window, operand 7, single buffered']
    #allocation8 [shape = 'u8[512]{0}', space=vmem, size = 0x400, scoped, tag = 'input window, operand 8, single buffered']
    #allocation9 [shape = 's32[1]{0}', space=sflag, size = 0x4, scoped, tag = 'scoped memory for tpu_custom_call.1']
    #allocation10 [shape = 'u8[512]{0}', space=vmem, size = 0x400, scoped, tag = 'input window, operand 9, single buffered']
    #allocation11 [shape = 'u8[8192]{0}', space=vmem, size = 0x2000, scoped, tag = 'output window, operand 0, single buffered']
    %19 = vsyncpa [#allocation3], 0
    %20 = vsyncpa [#allocation6], 0
    %21 = vsyncpa [#allocation9], 0
    %22 = vsyncpa [#allocation4], 0
    // Predicated region
    $region2: #{tpu_custom_call.1} parent=1 // pred_check
      _
    $region3: #{tpu_custom_call.1} parent=1 // pred_check_branch
      %24 = sbr.rel (0) target = $region5
    $region4: #{tpu_custom_call.1} parent=1 // pred_region
      _
    $region5: #{tpu_custom_call.1} parent=1 // pred_fallthru
      _
    // Predicated region
    $region6: #{tpu_custom_call.1} parent=1 // pred_check
      _
    $region7: #{tpu_custom_call.1} parent=1 // pred_check_branch
      %26 = sbr.rel (0) target = $region9
    $region8: #{tpu_custom_call.1} parent=1 // pred_region
      _
    $region9: #{tpu_custom_call.1} parent=1 // pred_fallthru
      _
    // Predicated region
    $region10: #{tpu_custom_call.1} parent=1 // pred_check
      _
    $region11: #{tpu_custom_call.1} parent=1 // pred_check_branch
      %28 = sbr.rel (0) target = $region13
    $region12: #{tpu_custom_call.1} parent=1 // pred_region
      _
    $region13: #{tpu_custom_call.1} parent=1 // pred_fallthru
      _
    // Predicated region
    $region14: #{tpu_custom_call.1} parent=1 // pred_check
      _
    $region15: #{tpu_custom_call.1} parent=1 // pred_check_branch
      %30 = sbr.rel (0) target = $region17
    $region16: #{tpu_custom_call.1} parent=1 // pred_region
      _
    $region17: #{tpu_custom_call.1} parent=1 // pred_fallthru
      _
    // Predicated region
    $region18: #{tpu_custom_call.1} parent=1 // pred_check
      _
    $region19: #{tpu_custom_call.1} parent=1 // pred_check_branch
      %32 = sbr.rel (0) target = $region21
    $region20: #{tpu_custom_call.1} parent=1 // pred_region
      _
    $region21: #{tpu_custom_call.1} parent=1 // pred_fallthru
      _
    // Predicated region
    $region22: #{tpu_custom_call.1} parent=1 // pred_check
      _
    $region23: #{tpu_custom_call.1} parent=1 // pred_check_branch
      %34 = sbr.rel (0) target = $region25
    $region24: #{tpu_custom_call.1} parent=1 // pred_region
      %s36 = ssub.s32 16, 16
      %37 = vsyncadd [#allocation3], %s36
      %s39 = sshll.u32 [#allocation2], 4
      %s40 = int_to_ptr.vmem [resolvable:$true] %s39
      %42 = dma.hbm_to_vmem [thread:$0]  %s5, 16, %s40, [#allocation3]
    $region25: #{tpu_custom_call.1} parent=1 // pred_fallthru
      _
    // Predicated region
    $region26: #{tpu_custom_call.1} parent=1 // pred_check
      _
    $region27: #{tpu_custom_call.1} parent=1 // pred_check_branch
      %44 = sbr.rel (0) target = $region29
    $region28: #{tpu_custom_call.1} parent=1 // pred_region
      %s46 = ssub.s32 256, 256
      %47 = vsyncadd [#allocation6], %s46
      %s48 = sshll.u32 [#allocation5], 4
      %s49 = int_to_ptr.vmem [resolvable:$true] %s48
      %54 = dma.hbm_to_vmem [thread:$0]  %s6, 256, %s49, [#allocation6], 64, 64, 4
    $region29: #{tpu_custom_call.1} parent=1 // pred_fallthru
      _
    // Predicated region
    $region30: #{tpu_custom_call.1} parent=1 // pred_check
      _
    $region31: #{tpu_custom_call.1} parent=1 // pred_check_branch
      %56 = sbr.rel (0) target = $region33
    $region32: #{tpu_custom_call.1} parent=1 // pred_region
      %s58 = ssub.s32 16, 16
      %59 = vsyncadd [#allocation6], %s58
      %s61 = sshll.u32 [#allocation7], 4
      %s62 = int_to_ptr.vmem [resolvable:$true] %s61
      %64 = dma.hbm_to_vmem [thread:$0]  %s7, 16, %s62, [#allocation6]
    $region33: #{tpu_custom_call.1} parent=1 // pred_fallthru
      _
    // Predicated region
    $region34: #{tpu_custom_call.1} parent=1 // pred_check
      _
    $region35: #{tpu_custom_call.1} parent=1 // pred_check_branch
      %66 = sbr.rel (0) target = $region37
    $region36: #{tpu_custom_call.1} parent=1 // pred_region
      %s68 = ssub.s32 16, 16
      %69 = vsyncadd [#allocation9], %s68
      %s71 = sshll.u32 [#allocation8], 4
      %s72 = int_to_ptr.vmem [resolvable:$true] %s71
      %74 = dma.hbm_to_vmem [thread:$0]  %s8, 16, %s72, [#allocation9]
    $region37: #{tpu_custom_call.1} parent=1 // pred_fallthru
      _
    // Predicated region
    $region38: #{tpu_custom_call.1} parent=1 // pred_check
      _
    $region39: #{tpu_custom_call.1} parent=1 // pred_check_branch
      %76 = sbr.rel (0) target = $region41
    $region40: #{tpu_custom_call.1} parent=1 // pred_region
      %s78 = ssub.s32 16, 16
      %79 = vsyncadd [#allocation9], %s78
      %s81 = sshll.u32 [#allocation10], 4
      %s82 = int_to_ptr.vmem [resolvable:$true] %s81
      %84 = dma.hbm_to_vmem [thread:$0]  %s9, 16, %s82, [#allocation9]
    $region41: #{tpu_custom_call.1} parent=1 // pred_fallthru
      _
    // Predicated region
    $region42: #{tpu_custom_call.1} parent=1 // pred_check
      _
    $region43: #{tpu_custom_call.1} parent=1 // pred_check_branch
      %86 = sbr.rel (0) target = $region45
    $region44: #{tpu_custom_call.1} parent=1 // pred_region
      _
    $region45: #{tpu_custom_call.1} parent=1 // pred_fallthru
      _
    // Predicated region
    $region46: #{tpu_custom_call.1} parent=1 // pred_check
      _
    $region47: #{tpu_custom_call.1} parent=1 // pred_check_branch
      %88 = sbr.rel (0) target = $region49
    $region48: #{tpu_custom_call.1} parent=1 // pred_region
      _
    $region49: #{tpu_custom_call.1} parent=1 // pred_fallthru
      _
    // Predicated region
    $region50: #{tpu_custom_call.1} parent=1 // pred_check
      _
    $region51: #{tpu_custom_call.1} parent=1 // pred_check_branch
      %90 = sbr.rel (0) target = $region53
    $region52: #{tpu_custom_call.1} parent=1 // pred_region
      _
    $region53: #{tpu_custom_call.1} parent=1 // pred_fallthru
      _
    // Predicated region
    $region54: #{tpu_custom_call.1} parent=1 // pred_check
      _
    $region55: #{tpu_custom_call.1} parent=1 // pred_check_branch
      %92 = sbr.rel (0) target = $region57
    $region56: #{tpu_custom_call.1} parent=1 // pred_region
      _
    $region57: #{tpu_custom_call.1} parent=1 // pred_fallthru
      _
    // Predicated region
    $region58: #{tpu_custom_call.1} parent=1 // pred_check
      _
    $region59: #{tpu_custom_call.1} parent=1 // pred_check_branch
      %94 = sbr.rel (0) target = $region61
    $region60: #{tpu_custom_call.1} parent=1 // pred_region
      %95 = dma.done [#allocation3], 16
    $region61: #{tpu_custom_call.1} parent=1 // pred_fallthru
      _
    // Predicated region
    $region62: #{tpu_custom_call.1} parent=1 // pred_check
      _
    $region63: #{tpu_custom_call.1} parent=1 // pred_check_branch
      %97 = sbr.rel (0) target = $region65
    $region64: #{tpu_custom_call.1} parent=1 // pred_region
      %98 = dma.done [#allocation6], 256
    $region65: #{tpu_custom_call.1} parent=1 // pred_fallthru
      _
    // Predicated region
    $region66: #{tpu_custom_call.1} parent=1 // pred_check
      _
    $region67: #{tpu_custom_call.1} parent=1 // pred_check_branch
      %100 = sbr.rel (0) target = $region69
    $region68: #{tpu_custom_call.1} parent=1 // pred_region
      %101 = dma.done [#allocation6], 16
    $region69: #{tpu_custom_call.1} parent=1 // pred_fallthru
      _
    // Predicated region
    $region70: #{tpu_custom_call.1} parent=1 // pred_check
      _
    $region71: #{tpu_custom_call.1} parent=1 // pred_check_branch
      %103 = sbr.rel (0) target = $region73
    $region72: #{tpu_custom_call.1} parent=1 // pred_region
      %104 = dma.done [#allocation9], 16
    $region73: #{tpu_custom_call.1} parent=1 // pred_fallthru
      _
    // Predicated region
    $region74: #{tpu_custom_call.1} parent=1 // pred_check
      _
    $region75: #{tpu_custom_call.1} parent=1 // pred_check_branch
      %106 = sbr.rel (0) target = $region77
    $region76: #{tpu_custom_call.1} parent=1 // pred_region
      %107 = dma.done [#allocation9], 16
    $region77: #{tpu_custom_call.1} parent=1 // pred_fallthru
      _
    %v109 = vld [vmem:[%s0] sm:$0xff]
    %v110 = vld [vmem:[%s0 + $0x8] sm:$0xff]
    %v111 = vld [vmem:[%s1] sm:$0xff]
    %v112 = vld [vmem:[%s1 + $0x8] sm:$0xff]
    %v113 = vld [vmem:[%s2] sm:$0x1]
    %v114 = vld [vmem:[%s3] sm:$0x1]
    %vm115 = vcmask 261120
    %v116 = vsel %vm115, %v109, 0.0
    %117 = vadd.xlane.f32.xlu0 %v116
    %v118 = vpop.xlane.xlu0 %117
    %v119 = vsel %vm115, %v110, 0.0
    %120 = vadd.xlane.f32.xlu0 %v119
    %v121 = vpop.xlane.xlu0 %120
    %v122 = vrcp.pop 32.0
    %v123 = vmul.f32 %v118, %v122
    %v124 = vmul.f32 %v121, %v122
    %v125 = vsub.f32 %v109, %v123
    %v126 = vsub.f32 %v110, %v124
    %v127 = vmul.f32 %v125, %v125
    %v128 = vmul.f32 %v126, %v126
    %v129 = vsel %vm115, %v127, 0.0
    %130 = vadd.xlane.f32.xlu0 %v129
    %v131 = vpop.xlane.xlu0 %130
    %v132 = vsel %vm115, %v128, 0.0
    %133 = vadd.xlane.f32.xlu0 %v132
    %v134 = vpop.xlane.xlu0 %133
    %v135 = vmul.f32 %v131, 0.032258064
    %v136 = vmul.f32 %v134, 0.032258064
    %v138 = vlaneseq
    %v139 = vshrl.u32 %v138, 7
    %v140 = vsub.s32 0, %v139
    %v141 = vrot.slane %v113, %v140
    %v143 = vmul.f32 %v141, %v125
    %v144 = vmul.f32 %v141, %v126
    %v145 = vrsqrt.pop %v135
    %v146 = vmul.f32 %v135, %v145
    %vm147 = vcmp.eq.f32.partialorder %v135, inf
    %v148 = vsel %vm147, %v135, %v146
    %vm149 = vcmp.eq.f32.partialorder %v135, 0.0
    %v150 = vand.u32 %v135, 2147483648
    %v151 = vsel %vm149, %v150, %v148
    %v152 = vrsqrt.pop %v136
    %v153 = vmul.f32 %v136, %v152
    %vm154 = vcmp.eq.f32.partialorder %v136, inf
    %v155 = vsel %vm154, %v136, %v153
    %vm156 = vcmp.eq.f32.partialorder %v136, 0.0
    %v157 = vand.u32 %v136, 2147483648
    %v158 = vsel %vm156, %v157, %v155
    %v159 = vadd.f32 %v151, 1e-06
    %v160 = vadd.f32 %v158, 1e-06
    %v161 = vrcp.pop %v159
    %v162 = vmul.f32 %v143, %v161
    %v163 = vrcp.pop %v160
    %v164 = vmul.f32 %v144, %v163
    %v166 = vlaneseq
    %v167 = vshrl.u32 %v166, 7
    %v168 = vsub.s32 0, %v167
    %v169 = vrot.slane %v114, %v168
    %v171 = vadd.f32 %v162, %v169
    %v172 = vadd.f32 %v164, %v169
    %v173 = vpack.c.bf16 %v172, %v171
    %v174 = vld [vmem:[%s4] sm:$0xf]
    %v175 = vld [vmem:[%s4 + $0x4] sm:$0xf]
    %v176 = vld [vmem:[%s4 + $0x8] sm:$0xf]
    %v177 = vld [vmem:[%s4 + $0xc] sm:$0xf]
    %v178 = vld [vmem:[#allocation2] sm:$0x1]
    %v180 = vlaneseq
    %v181 = vshrl.u32 %v180, 7
    %v182 = vsub.s32 0, %v181
    %v183 = vrot.slane %v178, %v182
    %v189 = vunpack.c.l.b16 %v174
    %v190 = vunpack.c.l.b16 %v175
    %v191 = vunpack.c.l.b16 %v176
    %v192 = vunpack.c.l.b16 %v177
    %v193 = vpack.c.b16 %v190, %v189
    %v194 = vpack.c.b16 %v192, %v191
    %v198 = vsel %vm115, %v173, 0
    %200 = vmatprep.subr.bf16.mxu0 0
    %201 = vmatpush1.bf16.msra.mxu0 %v193
    %202 = vmatprep.subr.bf16.mxu0 0
    %203 = vmatpush1.bf16.msra.mxu0 %v194
    %204 = vmatprep.subr.bf16.mxu0 0
    %205 = vmatpush1.bf16.msra.mxu0 0
    %206 = vmatprep.subr.bf16.mxu0 0
    %207 = vmatpush1.bf16.msra.mxu0 0
    %208 = vmatprep.subr.bf16.mxu0 0
    %209 = vmatpush1.bf16.msra.mxu0 0
    %210 = vmatprep.subr.bf16.mxu0 0
    %211 = vmatpush1.bf16.msra.mxu0 0
    %212 = vmatprep.subr.bf16.mxu0 0
    %213 = vmatpush1.bf16.msra.mxu0 0
    %214 = vmatprep.subr.bf16.mxu0 0
    %215 = vmatpush1.bf16.msra.mxu0 0
    %216 = vmatprep.subr.bf16.mxu0 0
    %217 = vmatpush1.bf16.msra.mxu0 0
    %218 = vmatprep.subr.bf16.mxu0 0
    %219 = vmatpush1.bf16.msra.mxu0 0
    %220 = vmatprep.subr.bf16.mxu0 0
    %221 = vmatpush1.bf16.msra.mxu0 0
    %222 = vmatprep.subr.bf16.mxu0 0
    %223 = vmatpush1.bf16.msra.mxu0 0
    %224 = vmatprep.subr.bf16.mxu0 0
    %225 = vmatpush1.bf16.msra.mxu0 0
    %226 = vmatprep.subr.bf16.mxu0 0
    %227 = vmatpush1.bf16.msra.mxu0 0
    %228 = vmatprep.subr.bf16.mxu0 0
    %229 = vmatpush1.bf16.msra.mxu0 0
    %230 = vmatprep.subr.bf16.mxu0 0
    %231 = vmatpush1.bf16.msra.mxu0 0
    %232 = vmatprep.mubr.bf16.mxu0 0
    %233 = vmatmul.mubr.bf16.gmra.mrb[0].mxu0 %v198
    %v234 = vpop.f32.mrb[0].mxu0
    %v235 = vadd.f32 %v183, %v234
    %v236 = vpop.f32.mrb[0].mxu0
    %v237 = vpop.f32.mrb[0].mxu0
    %v238 = vadd.f32 %v183, %v237
    %v239 = vpop.f32.mrb[0].mxu0
    %240 = vdwg.mxu0
    %v241 = vpack.c.bf16 %v238, %v235
    %v242 = vld [vmem:[#allocation5] sm:$0xf]
    %v243 = vld [vmem:[#allocation5 + $0x4] sm:$0xf]
    %v244 = vld [vmem:[#allocation5 + $0x8] sm:$0xf]
    %v245 = vld [vmem:[#allocation5 + $0xc] sm:$0xf]
    %247 = vrot.lane.b32.xlu0 %v241, 96
    %v248 = vpop.permute.xlu0 %247
    %vm249 = vcmask 64512
    %v251 = vsel %vm249, %v241, 0
    %v254 = vsel %vm249, %v248, 0
    %256 = vmatprep.subr.bf16.mxu0 0
    %257 = vmatpush1.bf16.xpose.msra.mxu0 %v254
    %258 = vmatprep.subr.bf16.mxu0 0
    %259 = vmatpush1.bf16.xpose.msra.mxu0 0
    %260 = vmatprep.subr.bf16.mxu0 0
    %261 = vmatpush1.bf16.xpose.msra.mxu0 0
    %262 = vmatprep.subr.bf16.mxu0 0
    %263 = vmatpush1.bf16.xpose.msra.mxu0 0
    %264 = vmatprep.subr.bf16.mxu0 0
    %265 = vmatpush1.bf16.xpose.msra.mxu0 0
    %266 = vmatprep.subr.bf16.mxu0 0
    %267 = vmatpush1.bf16.xpose.msra.mxu0 0
    %268 = vmatprep.subr.bf16.mxu0 0
    %269 = vmatpush1.bf16.xpose.msra.mxu0 0
    %270 = vmatprep.subr.bf16.mxu0 0
    %271 = vmatpush1.bf16.xpose.msra.mxu0 0
    %272 = vmatprep.subr.bf16.mxu0 0
    %273 = vmatpush1.bf16.xpose.msra.mxu0 0
    %274 = vmatprep.subr.bf16.mxu0 0
    %275 = vmatpush1.bf16.xpose.msra.mxu0 0
    %276 = vmatprep.subr.bf16.mxu0 0
    %277 = vmatpush1.bf16.xpose.msra.mxu0 0
    %278 = vmatprep.subr.bf16.mxu0 0
    %279 = vmatpush1.bf16.xpose.msra.mxu0 0
    %280 = vmatprep.subr.bf16.mxu0 0
    %281 = vmatpush1.bf16.xpose.msra.mxu0 0
    %282 = vmatprep.subr.bf16.mxu0 0
    %283 = vmatpush1.bf16.xpose.msra.mxu0 0
    %284 = vmatprep.subr.bf16.mxu0 0
    %285 = vmatpush1.bf16.xpose.msra.mxu0 0
    %286 = vmatprep.subr.bf16.mxu0 0
    %287 = vmatpush1.bf16.xpose.msra.mxu0 0
    %288 = vmatprep.mubr.bf16.mxu0 0
    %289 = vmatmul.mubr.bf16.gmra.mrb[0].mxu0 %v251
    %v290 = vpop.f32.mrb[0].mxu0
    %v291 = vadd.f32 %v111, %v290
    %v292 = vpop.f32.mrb[0].mxu0
    %v293 = vpop.f32.mrb[0].mxu0
    %v294 = vadd.f32 %v112, %v293
    %v295 = vpop.f32.mrb[0].mxu0
    %296 = vdwg.mxu0
    %vm297 = vcmask 130048
    %v298 = vsel %vm297, %v291, -inf
    %299 = vmax.xlane.f32.xlu0 %v298
    %v300 = vpop.xlane.xlu0 %299
    %v301 = vsel %vm297, %v294, -inf
    %302 = vmax.xlane.f32.xlu0 %v301
    %v303 = vpop.xlane.xlu0 %302
    %v304 = vsub.f32 %v291, %v300
    %v305 = vsub.f32 %v294, %v303
    %v306 = vmul.f32 %v304, 1.442695
    %v307 = vpow.pop %v306
    %v308 = vmul.f32 %v305, 1.442695
    %v309 = vpow.pop %v308
    %v310 = vsel %vm297, %v307, 0.0
    %311 = vadd.xlane.f32.xlu0 %v310
    %v312 = vpop.xlane.xlu0 %311
    %v313 = vsel %vm297, %v309, 0.0
    %314 = vadd.xlane.f32.xlu0 %v313
    %v315 = vpop.xlane.xlu0 %314
    %v316 = vrcp.pop %v312
    %v317 = vrcp.pop %v315
    %v318 = vmul.f32 %v307, %v316
    %v319 = vmul.f32 %v309, %v317
    %v320 = vpack.c.bf16 %v319, %v318
    %321 = vrot.lane.b32.xlu0 %v241, 64
    %v322 = vpop.permute.xlu0 %321
    %v325 = vsel %vm297, %v320, 0
    %327 = vmatprep.subr.bf16.mxu0 0
    %328 = vmatpush1.bf16.msra.mxu0 %v322
    %329 = vmatprep.subr.bf16.mxu0 0
    %330 = vmatpush1.bf16.msra.mxu0 0
    %331 = vmatprep.subr.bf16.mxu0 0
    %332 = vmatpush1.bf16.msra.mxu0 0
    %333 = vmatprep.subr.bf16.mxu0 0
    %334 = vmatpush1.bf16.msra.mxu0 0
    %335 = vmatprep.subr.bf16.mxu0 0
    %336 = vmatpush1.bf16.msra.mxu0 0
    %337 = vmatprep.subr.bf16.mxu0 0
    %338 = vmatpush1.bf16.msra.mxu0 0
    %339 = vmatprep.subr.bf16.mxu0 0
    %340 = vmatpush1.bf16.msra.mxu0 0
    %341 = vmatprep.subr.bf16.mxu0 0
    %342 = vmatpush1.bf16.msra.mxu0 0
    %343 = vmatprep.subr.bf16.mxu0 0
    %344 = vmatpush1.bf16.msra.mxu0 0
    %345 = vmatprep.subr.bf16.mxu0 0
    %346 = vmatpush1.bf16.msra.mxu0 0
    %347 = vmatprep.subr.bf16.mxu0 0
    %348 = vmatpush1.bf16.msra.mxu0 0
    %349 = vmatprep.subr.bf16.mxu0 0
    %350 = vmatpush1.bf16.msra.mxu0 0
    %351 = vmatprep.subr.bf16.mxu0 0
    %352 = vmatpush1.bf16.msra.mxu0 0
    %353 = vmatprep.subr.bf16.mxu0 0
    %354 = vmatpush1.bf16.msra.mxu0 0
    %355 = vmatprep.subr.bf16.mxu0 0
    %356 = vmatpush1.bf16.msra.mxu0 0
    %357 = vmatprep.subr.bf16.mxu0 0
    %358 = vmatpush1.bf16.msra.mxu0 0
    %359 = vmatprep.mubr.bf16.mxu0 0
    %360 = vmatmul.mubr.bf16.gmra.mrb[0].mxu0 %v325
    %v361 = vpop.f32.mrb[0].mxu0
    %v362 = vadd.f32 0.0, %v361
    %v363 = vpop.f32.mrb[0].mxu0
    %v364 = vpop.f32.mrb[0].mxu0
    %v365 = vadd.f32 0.0, %v364
    %v366 = vpop.f32.mrb[0].mxu0
    %367 = vdwg.mxu0
    %v368 = vpack.c.bf16 %v365, %v362
    %369 = vrot.lane.b32.xlu0 %v241, 120
    %v370 = vpop.permute.xlu0 %369
    %371 = vrot.lane.b32.xlu0 %v241, 88
    %v372 = vpop.permute.xlu0 %371
    %v374 = vsel %vm249, %v370, 0
    %v377 = vsel %vm249, %v372, 0
    %379 = vmatprep.subr.bf16.mxu0 0
    %380 = vmatpush1.bf16.xpose.msra.mxu0 %v377
    %381 = vmatprep.subr.bf16.mxu0 0
    %382 = vmatpush1.bf16.xpose.msra.mxu0 0
    %383 = vmatprep.subr.bf16.mxu0 0
    %384 = vmatpush1.bf16.xpose.msra.mxu0 0
    %385 = vmatprep.subr.bf16.mxu0 0
    %386 = vmatpush1.bf16.xpose.msra.mxu0 0
    %387 = vmatprep.subr.bf16.mxu0 0
    %388 = vmatpush1.bf16.xpose.msra.mxu0 0
    %389 = vmatprep.subr.bf16.mxu0 0
    %390 = vmatpush1.bf16.xpose.msra.mxu0 0
    %391 = vmatprep.subr.bf16.mxu0 0
    %392 = vmatpush1.bf16.xpose.msra.mxu0 0
    %393 = vmatprep.subr.bf16.mxu0 0
    %394 = vmatpush1.bf16.xpose.msra.mxu0 0
    %395 = vmatprep.subr.bf16.mxu0 0
    %396 = vmatpush1.bf16.xpose.msra.mxu0 0
    %397 = vmatprep.subr.bf16.mxu0 0
    %398 = vmatpush1.bf16.xpose.msra.mxu0 0
    %399 = vmatprep.subr.bf16.mxu0 0
    %400 = vmatpush1.bf16.xpose.msra.mxu0 0
    %401 = vmatprep.subr.bf16.mxu0 0
    %402 = vmatpush1.bf16.xpose.msra.mxu0 0
    %403 = vmatprep.subr.bf16.mxu0 0
    %404 = vmatpush1.bf16.xpose.msra.mxu0 0
    %405 = vmatprep.subr.bf16.mxu0 0
    %406 = vmatpush1.bf16.xpose.msra.mxu0 0
    %407 = vmatprep.subr.bf16.mxu0 0
    %408 = vmatpush1.bf16.xpose.msra.mxu0 0
    %409 = vmatprep.subr.bf16.mxu0 0
    %410 = vmatpush1.bf16.xpose.msra.mxu0 0
    %411 = vmatprep.mubr.bf16.mxu0 0
    %412 = vmatmul.mubr.bf16.gmra.mrb[0].mxu0 %v374
    %v413 = vpop.f32.mrb[0].mxu0
    %v414 = vadd.f32 %v111, %v413
    %v415 = vpop.f32.mrb[0].mxu0
    %v416 = vpop.f32.mrb[0].mxu0
    %v417 = vadd.f32 %v112, %v416
    %v418 = vpop.f32.mrb[0].mxu0
    %419 = vdwg.mxu0
    %v420 = vsel %vm297, %v414, -inf
    %421 = vmax.xlane.f32.xlu0 %v420
    %v422 = vpop.xlane.xlu0 %421
    %v423 = vsel %vm297, %v417, -inf
    %424 = vmax.xlane.f32.xlu0 %v423
    %v425 = vpop.xlane.xlu0 %424
    %v426 = vsub.f32 %v414, %v422
    %v427 = vsub.f32 %v417, %v425
    %v428 = vmul.f32 %v426, 1.442695
    %v429 = vpow.pop %v428
    %v430 = vmul.f32 %v427, 1.442695
    %v431 = vpow.pop %v430
    %v432 = vsel %vm297, %v429, 0.0
    %433 = vadd.xlane.f32.xlu0 %v432
    %v434 = vpop.xlane.xlu0 %433
    %v435 = vsel %vm297, %v431, 0.0
    %436 = vadd.xlane.f32.xlu0 %v435
    %v437 = vpop.xlane.xlu0 %436
    %v438 = vrcp.pop %v434
    %v439 = vrcp.pop %v437
    %v440 = vmul.f32 %v429, %v438
    %v441 = vmul.f32 %v431, %v439
    %v442 = vpack.c.bf16 %v441, %v440
    %443 = vrot.lane.b32.xlu0 %v241, 56
    %v444 = vpop.permute.xlu0 %443
    %v447 = vsel %vm297, %v442, 0
    %449 = vmatprep.subr.bf16.mxu0 0
    %450 = vmatpush1.bf16.msra.mxu0 %v444
    %451 = vmatprep.subr.bf16.mxu0 0
    %452 = vmatpush1.bf16.msra.mxu0 0
    %453 = vmatprep.subr.bf16.mxu0 0
    %454 = vmatpush1.bf16.msra.mxu0 0
    %455 = vmatprep.subr.bf16.mxu0 0
    %456 = vmatpush1.bf16.msra.mxu0 0
    %457 = vmatprep.subr.bf16.mxu0 0
    %458 = vmatpush1.bf16.msra.mxu0 0
    %459 = vmatprep.subr.bf16.mxu0 0
    %460 = vmatpush1.bf16.msra.mxu0 0
    %461 = vmatprep.subr.bf16.mxu0 0
    %462 = vmatpush1.bf16.msra.mxu0 0
    %463 = vmatprep.subr.bf16.mxu0 0
    %464 = vmatpush1.bf16.msra.mxu0 0
    %465 = vmatprep.subr.bf16.mxu0 0
    %466 = vmatpush1.bf16.msra.mxu0 0
    %467 = vmatprep.subr.bf16.mxu0 0
    %468 = vmatpush1.bf16.msra.mxu0 0
    %469 = vmatprep.subr.bf16.mxu0 0
    %470 = vmatpush1.bf16.msra.mxu0 0
    %471 = vmatprep.subr.bf16.mxu0 0
    %472 = vmatpush1.bf16.msra.mxu0 0
    %473 = vmatprep.subr.bf16.mxu0 0
    %474 = vmatpush1.bf16.msra.mxu0 0
    %475 = vmatprep.subr.bf16.mxu0 0
    %476 = vmatpush1.bf16.msra.mxu0 0
    %477 = vmatprep.subr.bf16.mxu0 0
    %478 = vmatpush1.bf16.msra.mxu0 0
    %479 = vmatprep.subr.bf16.mxu0 0
    %480 = vmatpush1.bf16.msra.mxu0 0
    %481 = vmatprep.mubr.bf16.mxu0 0
    %482 = vmatmul.mubr.bf16.gmra.mrb[0].mxu0 %v447
    %v483 = vpop.f32.mrb[0].mxu0
    %v484 = vadd.f32 0.0, %v483
    %v485 = vpop.f32.mrb[0].mxu0
    %v486 = vpop.f32.mrb[0].mxu0
    %v487 = vadd.f32 0.0, %v486
    %v488 = vpop.f32.mrb[0].mxu0
    %489 = vdwg.mxu0
    %v490 = vpack.c.bf16 %v487, %v484
    %v492 = vsel %vm249, %v490, 0
    %vm494 = vcmask 1043456
    %v496 = vsel %vm494, %v243, 0
    %498 = vmatprep.subr.bf16.mxu0 0
    %499 = vmatpush1.bf16.msra.mxu0 %v496
    %500 = vmatprep.subr.bf16.mxu0 0
    %501 = vmatpush1.bf16.msra.mxu0 0
    %502 = vmatprep.subr.bf16.mxu0 0
    %503 = vmatpush1.bf16.msra.mxu0 0
    %504 = vmatprep.subr.bf16.mxu0 0
    %505 = vmatpush1.bf16.msra.mxu0 0
    %506 = vmatprep.subr.bf16.mxu0 0
    %507 = vmatpush1.bf16.msra.mxu0 0
    %508 = vmatprep.subr.bf16.mxu0 0
    %509 = vmatpush1.bf16.msra.mxu0 0
    %510 = vmatprep.subr.bf16.mxu0 0
    %511 = vmatpush1.bf16.msra.mxu0 0
    %512 = vmatprep.subr.bf16.mxu0 0
    %513 = vmatpush1.bf16.msra.mxu0 0
    %514 = vmatprep.subr.bf16.mxu0 0
    %515 = vmatpush1.bf16.msra.mxu0 0
    %516 = vmatprep.subr.bf16.mxu0 0
    %517 = vmatpush1.bf16.msra.mxu0 0
    %518 = vmatprep.subr.bf16.mxu0 0
    %519 = vmatpush1.bf16.msra.mxu0 0
    %520 = vmatprep.subr.bf16.mxu0 0
    %521 = vmatpush1.bf16.msra.mxu0 0
    %522 = vmatprep.subr.bf16.mxu0 0
    %523 = vmatpush1.bf16.msra.mxu0 0
    %524 = vmatprep.subr.bf16.mxu0 0
    %525 = vmatpush1.bf16.msra.mxu0 0
    %526 = vmatprep.subr.bf16.mxu0 0
    %527 = vmatpush1.bf16.msra.mxu0 0
    %528 = vmatprep.subr.bf16.mxu0 0
    %529 = vmatpush1.bf16.msra.mxu0 0
    %530 = vmatprep.mubr.bf16.mxu0 0
    %531 = vmatmul.mubr.bf16.gmra.mrb[0].mxu0 %v492
    %v532 = vpop.f32.mrb[0].mxu0
    %v533 = vadd.f32 0.0, %v532
    %v534 = vpop.f32.mrb[0].mxu0
    %v535 = vpop.f32.mrb[0].mxu0
    %v536 = vadd.f32 0.0, %v535
    %v537 = vpop.f32.mrb[0].mxu0
    %538 = vdwg.mxu0
    %v540 = vsel %vm249, %v368, 0
    %v543 = vsel %vm494, %v242, 0
    %545 = vmatprep.subr.bf16.mxu0 0
    %546 = vmatpush1.bf16.msra.mxu0 %v543
    %547 = vmatprep.subr.bf16.mxu0 0
    %548 = vmatpush1.bf16.msra.mxu0 0
    %549 = vmatprep.subr.bf16.mxu0 0
    %550 = vmatpush1.bf16.msra.mxu0 0
    %551 = vmatprep.subr.bf16.mxu0 0
    %552 = vmatpush1.bf16.msra.mxu0 0
    %553 = vmatprep.subr.bf16.mxu0 0
    %554 = vmatpush1.bf16.msra.mxu0 0
    %555 = vmatprep.subr.bf16.mxu0 0
    %556 = vmatpush1.bf16.msra.mxu0 0
    %557 = vmatprep.subr.bf16.mxu0 0
    %558 = vmatpush1.bf16.msra.mxu0 0
    %559 = vmatprep.subr.bf16.mxu0 0
    %560 = vmatpush1.bf16.msra.mxu0 0
    %561 = vmatprep.subr.bf16.mxu0 0
    %562 = vmatpush1.bf16.msra.mxu0 0
    %563 = vmatprep.subr.bf16.mxu0 0
    %564 = vmatpush1.bf16.msra.mxu0 0
    %565 = vmatprep.subr.bf16.mxu0 0
    %566 = vmatpush1.bf16.msra.mxu0 0
    %567 = vmatprep.subr.bf16.mxu0 0
    %568 = vmatpush1.bf16.msra.mxu0 0
    %569 = vmatprep.subr.bf16.mxu0 0
    %570 = vmatpush1.bf16.msra.mxu0 0
    %571 = vmatprep.subr.bf16.mxu0 0
    %572 = vmatpush1.bf16.msra.mxu0 0
    %573 = vmatprep.subr.bf16.mxu0 0
    %574 = vmatpush1.bf16.msra.mxu0 0
    %575 = vmatprep.subr.bf16.mxu0 0
    %576 = vmatpush1.bf16.msra.mxu0 0
    %577 = vmatprep.mubr.bf16.mxu0 0
    %578 = vmatmul.mubr.bf16.gmra.mrb[0].mxu0 %v540
    %v579 = vpop.f32.mrb[0].mxu0
    %v580 = vadd.f32 %v533, %v579
    %v581 = vpop.f32.mrb[0].mxu0
    %v582 = vpop.f32.mrb[0].mxu0
    %v583 = vadd.f32 %v536, %v582
    %v584 = vpop.f32.mrb[0].mxu0
    %585 = vdwg.mxu0
    %586 = vrot.lane.b32.xlu0 %v241, 112
    %v587 = vpop.permute.xlu0 %586
    %588 = vrot.lane.b32.xlu0 %v241, 80
    %v589 = vpop.permute.xlu0 %588
    %v591 = vsel %vm249, %v587, 0
    %v594 = vsel %vm249, %v589, 0
    %596 = vmatprep.subr.bf16.mxu0 0
    %597 = vmatpush1.bf16.xpose.msra.mxu0 %v594
    %598 = vmatprep.subr.bf16.mxu0 0
    %599 = vmatpush1.bf16.xpose.msra.mxu0 0
    %600 = vmatprep.subr.bf16.mxu0 0
    %601 = vmatpush1.bf16.xpose.msra.mxu0 0
    %602 = vmatprep.subr.bf16.mxu0 0
    %603 = vmatpush1.bf16.xpose.msra.mxu0 0
    %604 = vmatprep.subr.bf16.mxu0 0
    %605 = vmatpush1.bf16.xpose.msra.mxu0 0
    %606 = vmatprep.subr.bf16.mxu0 0
    %607 = vmatpush1.bf16.xpose.msra.mxu0 0
    %608 = vmatprep.subr.bf16.mxu0 0
    %609 = vmatpush1.bf16.xpose.msra.mxu0 0
    %610 = vmatprep.subr.bf16.mxu0 0
    %611 = vmatpush1.bf16.xpose.msra.mxu0 0
    %612 = vmatprep.subr.bf16.mxu0 0
    %613 = vmatpush1.bf16.xpose.msra.mxu0 0
    %614 = vmatprep.subr.bf16.mxu0 0
    %615 = vmatpush1.bf16.xpose.msra.mxu0 0
    %616 = vmatprep.subr.bf16.mxu0 0
    %617 = vmatpush1.bf16.xpose.msra.mxu0 0
    %618 = vmatprep.subr.bf16.mxu0 0
    %619 = vmatpush1.bf16.xpose.msra.mxu0 0
    %620 = vmatprep.subr.bf16.mxu0 0
    %621 = vmatpush1.bf16.xpose.msra.mxu0 0
    %622 = vmatprep.subr.bf16.mxu0 0
    %623 = vmatpush1.bf16.xpose.msra.mxu0 0
    %624 = vmatprep.subr.bf16.mxu0 0
    %625 = vmatpush1.bf16.xpose.msra.mxu0 0
    %626 = vmatprep.subr.bf16.mxu0 0
    %627 = vmatpush1.bf16.xpose.msra.mxu0 0
    %628 = vmatprep.mubr.bf16.mxu0 0
    %629 = vmatmul.mubr.bf16.gmra.mrb[0].mxu0 %v591
    %v630 = vpop.f32.mrb[0].mxu0
    %v631 = vadd.f32 %v111, %v630
    %v632 = vpop.f32.mrb[0].mxu0
    %v633 = vpop.f32.mrb[0].mxu0
    %v634 = vadd.f32 %v112, %v633
    %v635 = vpop.f32.mrb[0].mxu0
    %636 = vdwg.mxu0
    %v637 = vsel %vm297, %v631, -inf
    %638 = vmax.xlane.f32.xlu0 %v637
    %v639 = vpop.xlane.xlu0 %638
    %v640 = vsel %vm297, %v634, -inf
    %641 = vmax.xlane.f32.xlu0 %v640
    %v642 = vpop.xlane.xlu0 %641
    %v643 = vsub.f32 %v631, %v639
    %v644 = vsub.f32 %v634, %v642
    %v645 = vmul.f32 %v643, 1.442695
    %v646 = vpow.pop %v645
    %v647 = vmul.f32 %v644, 1.442695
    %v648 = vpow.pop %v647
    %v649 = vsel %vm297, %v646, 0.0
    %650 = vadd.xlane.f32.xlu0 %v649
    %v651 = vpop.xlane.xlu0 %650
    %v652 = vsel %vm297, %v648, 0.0
    %653 = vadd.xlane.f32.xlu0 %v652
    %v654 = vpop.xlane.xlu0 %653
    %v655 = vrcp.pop %v651
    %v656 = vrcp.pop %v654
    %v657 = vmul.f32 %v646, %v655
    %v658 = vmul.f32 %v648, %v656
    %v659 = vpack.c.bf16 %v658, %v657
    %660 = vrot.lane.b32.xlu0 %v241, 48
    %v661 = vpop.permute.xlu0 %660
    %v664 = vsel %vm297, %v659, 0
    %666 = vmatprep.subr.bf16.mxu0 0
    %667 = vmatpush1.bf16.msra.mxu0 %v661
    %668 = vmatprep.subr.bf16.mxu0 0
    %669 = vmatpush1.bf16.msra.mxu0 0
    %670 = vmatprep.subr.bf16.mxu0 0
    %671 = vmatpush1.bf16.msra.mxu0 0
    %672 = vmatprep.subr.bf16.mxu0 0
    %673 = vmatpush1.bf16.msra.mxu0 0
    %674 = vmatprep.subr.bf16.mxu0 0
    %675 = vmatpush1.bf16.msra.mxu0 0
    %676 = vmatprep.subr.bf16.mxu0 0
    %677 = vmatpush1.bf16.msra.mxu0 0
    %678 = vmatprep.subr.bf16.mxu0 0
    %679 = vmatpush1.bf16.msra.mxu0 0
    %680 = vmatprep.subr.bf16.mxu0 0
    %681 = vmatpush1.bf16.msra.mxu0 0
    %682 = vmatprep.subr.bf16.mxu0 0
    %683 = vmatpush1.bf16.msra.mxu0 0
    %684 = vmatprep.subr.bf16.mxu0 0
    %685 = vmatpush1.bf16.msra.mxu0 0
    %686 = vmatprep.subr.bf16.mxu0 0
    %687 = vmatpush1.bf16.msra.mxu0 0
    %688 = vmatprep.subr.bf16.mxu0 0
    %689 = vmatpush1.bf16.msra.mxu0 0
    %690 = vmatprep.subr.bf16.mxu0 0
    %691 = vmatpush1.bf16.msra.mxu0 0
    %692 = vmatprep.subr.bf16.mxu0 0
    %693 = vmatpush1.bf16.msra.mxu0 0
    %694 = vmatprep.subr.bf16.mxu0 0
    %695 = vmatpush1.bf16.msra.mxu0 0
    %696 = vmatprep.subr.bf16.mxu0 0
    %697 = vmatpush1.bf16.msra.mxu0 0
    %698 = vmatprep.mubr.bf16.mxu0 0
    %699 = vmatmul.mubr.bf16.gmra.mrb[0].mxu0 %v664
    %v700 = vpop.f32.mrb[0].mxu0
    %v701 = vadd.f32 0.0, %v700
    %v702 = vpop.f32.mrb[0].mxu0
    %v703 = vpop.f32.mrb[0].mxu0
    %v704 = vadd.f32 0.0, %v703
    %v705 = vpop.f32.mrb[0].mxu0
    %706 = vdwg.mxu0
    %v707 = vpack.c.bf16 %v704, %v701
    %v709 = vsel %vm249, %v707, 0
    %v712 = vsel %vm494, %v244, 0
    %714 = vmatprep.subr.bf16.mxu0 0
    %715 = vmatpush1.bf16.msra.mxu0 %v712
    %716 = vmatprep.subr.bf16.mxu0 0
    %717 = vmatpush1.bf16.msra.mxu0 0
    %718 = vmatprep.subr.bf16.mxu0 0
    %719 = vmatpush1.bf16.msra.mxu0 0
    %720 = vmatprep.subr.bf16.mxu0 0
    %721 = vmatpush1.bf16.msra.mxu0 0
    %722 = vmatprep.subr.bf16.mxu0 0
    %723 = vmatpush1.bf16.msra.mxu0 0
    %724 = vmatprep.subr.bf16.mxu0 0
    %725 = vmatpush1.bf16.msra.mxu0 0
    %726 = vmatprep.subr.bf16.mxu0 0
    %727 = vmatpush1.bf16.msra.mxu0 0
    %728 = vmatprep.subr.bf16.mxu0 0
    %729 = vmatpush1.bf16.msra.mxu0 0
    %730 = vmatprep.subr.bf16.mxu0 0
    %731 = vmatpush1.bf16.msra.mxu0 0
    %732 = vmatprep.subr.bf16.mxu0 0
    %733 = vmatpush1.bf16.msra.mxu0 0
    %734 = vmatprep.subr.bf16.mxu0 0
    %735 = vmatpush1.bf16.msra.mxu0 0
    %736 = vmatprep.subr.bf16.mxu0 0
    %737 = vmatpush1.bf16.msra.mxu0 0
    %738 = vmatprep.subr.bf16.mxu0 0
    %739 = vmatpush1.bf16.msra.mxu0 0
    %740 = vmatprep.subr.bf16.mxu0 0
    %741 = vmatpush1.bf16.msra.mxu0 0
    %742 = vmatprep.subr.bf16.mxu0 0
    %743 = vmatpush1.bf16.msra.mxu0 0
    %744 = vmatprep.subr.bf16.mxu0 0
    %745 = vmatpush1.bf16.msra.mxu0 0
    %746 = vmatprep.mubr.bf16.mxu0 0
    %747 = vmatmul.mubr.bf16.gmra.mrb[0].mxu0 %v709
    %v748 = vpop.f32.mrb[0].mxu0
    %v749 = vadd.f32 0.0, %v748
    %v750 = vpop.f32.mrb[0].mxu0
    %v751 = vpop.f32.mrb[0].mxu0
    %v752 = vadd.f32 0.0, %v751
    %v753 = vpop.f32.mrb[0].mxu0
    %754 = vdwg.mxu0
    %v755 = vadd.f32 %v580, %v749
    %v756 = vadd.f32 %v583, %v752
    %757 = vrot.lane.b32.xlu0 %v241, 104
    %v758 = vpop.permute.xlu0 %757
    %759 = vrot.lane.b32.xlu0 %v241, 72
    %v760 = vpop.permute.xlu0 %759
    %v762 = vsel %vm249, %v758, 0
    %v765 = vsel %vm249, %v760, 0
    %767 = vmatprep.subr.bf16.mxu0 0
    %768 = vmatpush1.bf16.xpose.msra.mxu0 %v765
    %769 = vmatprep.subr.bf16.mxu0 0
    %770 = vmatpush1.bf16.xpose.msra.mxu0 0
    %771 = vmatprep.subr.bf16.mxu0 0
    %772 = vmatpush1.bf16.xpose.msra.mxu0 0
    %773 = vmatprep.subr.bf16.mxu0 0
    %774 = vmatpush1.bf16.xpose.msra.mxu0 0
    %775 = vmatprep.subr.bf16.mxu0 0
    %776 = vmatpush1.bf16.xpose.msra.mxu0 0
    %777 = vmatprep.subr.bf16.mxu0 0
    %778 = vmatpush1.bf16.xpose.msra.mxu0 0
    %779 = vmatprep.subr.bf16.mxu0 0
    %780 = vmatpush1.bf16.xpose.msra.mxu0 0
    %781 = vmatprep.subr.bf16.mxu0 0
    %782 = vmatpush1.bf16.xpose.msra.mxu0 0
    %783 = vmatprep.subr.bf16.mxu0 0
    %784 = vmatpush1.bf16.xpose.msra.mxu0 0
    %785 = vmatprep.subr.bf16.mxu0 0
    %786 = vmatpush1.bf16.xpose.msra.mxu0 0
    %787 = vmatprep.subr.bf16.mxu0 0
    %788 = vmatpush1.bf16.xpose.msra.mxu0 0
    %789 = vmatprep.subr.bf16.mxu0 0
    %790 = vmatpush1.bf16.xpose.msra.mxu0 0
    %791 = vmatprep.subr.bf16.mxu0 0
    %792 = vmatpush1.bf16.xpose.msra.mxu0 0
    %793 = vmatprep.subr.bf16.mxu0 0
    %794 = vmatpush1.bf16.xpose.msra.mxu0 0
    %795 = vmatprep.subr.bf16.mxu0 0
    %796 = vmatpush1.bf16.xpose.msra.mxu0 0
    %797 = vmatprep.subr.bf16.mxu0 0
    %798 = vmatpush1.bf16.xpose.msra.mxu0 0
    %799 = vmatprep.mubr.bf16.mxu0 0
    %800 = vmatmul.mubr.bf16.gmra.mrb[0].mxu0 %v762
    %v801 = vpop.f32.mrb[0].mxu0
    %v802 = vadd.f32 %v111, %v801
    %v803 = vpop.f32.mrb[0].mxu0
    %v804 = vpop.f32.mrb[0].mxu0
    %v805 = vadd.f32 %v112, %v804
    %v806 = vpop.f32.mrb[0].mxu0
    %807 = vdwg.mxu0
    %v808 = vsel %vm297, %v802, -inf
    %809 = vmax.xlane.f32.xlu0 %v808
    %v810 = vpop.xlane.xlu0 %809
    %v811 = vsel %vm297, %v805, -inf
    %812 = vmax.xlane.f32.xlu0 %v811
    %v813 = vpop.xlane.xlu0 %812
    %v814 = vsub.f32 %v802, %v810
    %v815 = vsub.f32 %v805, %v813
    %v816 = vmul.f32 %v814, 1.442695
    %v817 = vpow.pop %v816
    %v818 = vmul.f32 %v815, 1.442695
    %v819 = vpow.pop %v818
    %v820 = vsel %vm297, %v817, 0.0
    %821 = vadd.xlane.f32.xlu0 %v820
    %v822 = vpop.xlane.xlu0 %821
    %v823 = vsel %vm297, %v819, 0.0
    %824 = vadd.xlane.f32.xlu0 %v823
    %v825 = vpop.xlane.xlu0 %824
    %v826 = vrcp.pop %v822
    %v827 = vrcp.pop %v825
    %v828 = vmul.f32 %v817, %v826
    %v829 = vmul.f32 %v819, %v827
    %v830 = vpack.c.bf16 %v829, %v828
    %831 = vrot.lane.b32.xlu0 %v241, 40
    %v832 = vpop.permute.xlu0 %831
    %v835 = vsel %vm297, %v830, 0
    %837 = vmatprep.subr.bf16.mxu0 0
    %838 = vmatpush1.bf16.msra.mxu0 %v832
    %839 = vmatprep.subr.bf16.mxu0 0
    %840 = vmatpush1.bf16.msra.mxu0 0
    %841 = vmatprep.subr.bf16.mxu0 0
    %842 = vmatpush1.bf16.msra.mxu0 0
    %843 = vmatprep.subr.bf16.mxu0 0
    %844 = vmatpush1.bf16.msra.mxu0 0
    %845 = vmatprep.subr.bf16.mxu0 0
    %846 = vmatpush1.bf16.msra.mxu0 0
    %847 = vmatprep.subr.bf16.mxu0 0
    %848 = vmatpush1.bf16.msra.mxu0 0
    %849 = vmatprep.subr.bf16.mxu0 0
    %850 = vmatpush1.bf16.msra.mxu0 0
    %851 = vmatprep.subr.bf16.mxu0 0
    %852 = vmatpush1.bf16.msra.mxu0 0
    %853 = vmatprep.subr.bf16.mxu0 0
    %854 = vmatpush1.bf16.msra.mxu0 0
    %855 = vmatprep.subr.bf16.mxu0 0
    %856 = vmatpush1.bf16.msra.mxu0 0
    %857 = vmatprep.subr.bf16.mxu0 0
    %858 = vmatpush1.bf16.msra.mxu0 0
    %859 = vmatprep.subr.bf16.mxu0 0
    %860 = vmatpush1.bf16.msra.mxu0 0
    %861 = vmatprep.subr.bf16.mxu0 0
    %862 = vmatpush1.bf16.msra.mxu0 0
    %863 = vmatprep.subr.bf16.mxu0 0
    %864 = vmatpush1.bf16.msra.mxu0 0
    %865 = vmatprep.subr.bf16.mxu0 0
    %866 = vmatpush1.bf16.msra.mxu0 0
    %867 = vmatprep.subr.bf16.mxu0 0
    %868 = vmatpush1.bf16.msra.mxu0 0
    %869 = vmatprep.mubr.bf16.mxu0 0
    %870 = vmatmul.mubr.bf16.gmra.mrb[0].mxu0 %v835
    %v871 = vpop.f32.mrb[0].mxu0
    %v872 = vadd.f32 0.0, %v871
    %v873 = vpop.f32.mrb[0].mxu0
    %v874 = vpop.f32.mrb[0].mxu0
    %v875 = vadd.f32 0.0, %v874
    %v876 = vpop.f32.mrb[0].mxu0
    %877 = vdwg.mxu0
    %v878 = vpack.c.bf16 %v875, %v872
    %v880 = vsel %vm249, %v878, 0
    %v883 = vsel %vm494, %v245, 0
    %885 = vmatprep.subr.bf16.mxu0 0
    %886 = vmatpush1.bf16.msra.mxu0 %v883
    %887 = vmatprep.subr.bf16.mxu0 0
    %888 = vmatpush1.bf16.msra.mxu0 0
    %889 = vmatprep.subr.bf16.mxu0 0
    %890 = vmatpush1.bf16.msra.mxu0 0
    %891 = vmatprep.subr.bf16.mxu0 0
    %892 = vmatpush1.bf16.msra.mxu0 0
    %893 = vmatprep.subr.bf16.mxu0 0
    %894 = vmatpush1.bf16.msra.mxu0 0
    %895 = vmatprep.subr.bf16.mxu0 0
    %896 = vmatpush1.bf16.msra.mxu0 0
    %897 = vmatprep.subr.bf16.mxu0 0
    %898 = vmatpush1.bf16.msra.mxu0 0
    %899 = vmatprep.subr.bf16.mxu0 0
    %900 = vmatpush1.bf16.msra.mxu0 0
    %901 = vmatprep.subr.bf16.mxu0 0
    %902 = vmatpush1.bf16.msra.mxu0 0
    %903 = vmatprep.subr.bf16.mxu0 0
    %904 = vmatpush1.bf16.msra.mxu0 0
    %905 = vmatprep.subr.bf16.mxu0 0
    %906 = vmatpush1.bf16.msra.mxu0 0
    %907 = vmatprep.subr.bf16.mxu0 0
    %908 = vmatpush1.bf16.msra.mxu0 0
    %909 = vmatprep.subr.bf16.mxu0 0
    %910 = vmatpush1.bf16.msra.mxu0 0
    %911 = vmatprep.subr.bf16.mxu0 0
    %912 = vmatpush1.bf16.msra.mxu0 0
    %913 = vmatprep.subr.bf16.mxu0 0
    %914 = vmatpush1.bf16.msra.mxu0 0
    %915 = vmatprep.subr.bf16.mxu0 0
    %916 = vmatpush1.bf16.msra.mxu0 0
    %917 = vmatprep.mubr.bf16.mxu0 0
    %918 = vmatmul.mubr.bf16.gmra.mrb[0].mxu0 %v880
    %v919 = vpop.f32.mrb[0].mxu0
    %v920 = vadd.f32 0.0, %v919
    %v921 = vpop.f32.mrb[0].mxu0
    %v922 = vpop.f32.mrb[0].mxu0
    %v923 = vadd.f32 0.0, %v922
    %v924 = vpop.f32.mrb[0].mxu0
    %925 = vdwg.mxu0
    %v926 = vadd.f32 %v755, %v920
    %v927 = vadd.f32 %v756, %v923
    %v928 = vadd.f32 %v109, %v926
    %v929 = vadd.f32 %v110, %v927
    %v930 = vld [vmem:[#allocation7] sm:$0x1]
    %v932 = vlaneseq
    %v933 = vshrl.u32 %v932, 7
    %v934 = vsub.s32 0, %v933
    %v935 = vrot.slane %v930, %v934
    %v937 = vadd.f32 %v928, %v935
    %v938 = vadd.f32 %v929, %v935
    %v939 = vld [vmem:[#allocation8] sm:$0x1]
    %v940 = vld [vmem:[#allocation10] sm:$0x1]
    %v941 = vsel %vm115, %v937, 0.0
    %942 = vadd.xlane.f32.xlu0 %v941
    %v943 = vpop.xlane.xlu0 %942
    %v944 = vsel %vm115, %v938, 0.0
    %945 = vadd.xlane.f32.xlu0 %v944
    %v946 = vpop.xlane.xlu0 %945
    %v947 = vmul.f32 %v943, %v122
    %v948 = vmul.f32 %v946, %v122
    %v949 = vsub.f32 %v937, %v947
    %v950 = vsub.f32 %v938, %v948
    %v951 = vmul.f32 %v949, %v949
    %v952 = vmul.f32 %v950, %v950
    %v953 = vsel %vm115, %v951, 0.0
    %954 = vadd.xlane.f32.xlu0 %v953
    %v955 = vpop.xlane.xlu0 %954
    %v956 = vsel %vm115, %v952, 0.0
    %957 = vadd.xlane.f32.xlu0 %v956
    %v958 = vpop.xlane.xlu0 %957
    %v959 = vmul.f32 %v955, 0.032258064
    %v960 = vmul.f32 %v958, 0.032258064
    %v962 = vlaneseq
    %v963 = vshrl.u32 %v962, 7
    %v964 = vsub.s32 0, %v963
    %v965 = vrot.slane %v939, %v964
    %v967 = vmul.f32 %v965, %v949
    %v968 = vmul.f32 %v965, %v950
    %v969 = vrsqrt.pop %v959
    %v970 = vmul.f32 %v959, %v969
    %vm971 = vcmp.eq.f32.partialorder %v959, inf
    %v972 = vsel %vm971, %v959, %v970
    %vm973 = vcmp.eq.f32.partialorder %v959, 0.0
    %v974 = vand.u32 %v959, 2147483648
    %v975 = vsel %vm973, %v974, %v972
    %v976 = vrsqrt.pop %v960
    %v977 = vmul.f32 %v960, %v976
    %vm978 = vcmp.eq.f32.partialorder %v960, inf
    %v979 = vsel %vm978, %v960, %v977
    %vm980 = vcmp.eq.f32.partialorder %v960, 0.0
    %v981 = vand.u32 %v960, 2147483648
    %v982 = vsel %vm980, %v981, %v979
    %v983 = vadd.f32 %v975, 1e-06
    %v984 = vadd.f32 %v982, 1e-06
    %v985 = vrcp.pop %v983
    %v986 = vmul.f32 %v967, %v985
    %v987 = vrcp.pop %v984
    %v988 = vmul.f32 %v968, %v987
    %v990 = vlaneseq
    %v991 = vshrl.u32 %v990, 7
    %v992 = vsub.s32 0, %v991
    %v993 = vrot.slane %v940, %v992
    %v995 = vadd.f32 %v986, %v993
    %v996 = vadd.f32 %v988, %v993
    %v997 = vpack.c.bf16 %v996, %v995
    %v998 = vld [vmem:[%s10] sm:$0xf]
    %v999 = vld [vmem:[%s10 + $0x4] sm:$0xf]
    %v1000 = vld [vmem:[%s10 + $0x8] sm:$0xf]
    %v1001 = vld [vmem:[%s10 + $0xc] sm:$0xf]
    %v1002 = vld [vmem:[%s11] sm:$0x1]
    %v1004 = vlaneseq
    %v1005 = vshrl.u32 %v1004, 7
    %v1006 = vsub.s32 0, %v1005
    %v1007 = vrot.slane %v1002, %v1006
    %v1013 = vunpack.c.l.b16 %v998
    %v1014 = vunpack.c.l.b16 %v999
    %v1015 = vunpack.c.l.b16 %v1000
    %v1016 = vunpack.c.l.b16 %v1001
    %v1017 = vpack.c.b16 %v1014, %v1013
    %v1018 = vpack.c.b16 %v1016, %v1015
    %v1022 = vsel %vm115, %v997, 0
    %1024 = vmatprep.subr.bf16.mxu0 0
    %1025 = vmatpush1.bf16.msra.mxu0 %v1017
    %1026 = vmatprep.subr.bf16.mxu0 0
    %1027 = vmatpush1.bf16.msra.mxu0 %v1018
    %1028 = vmatprep.subr.bf16.mxu0 0
    %1029 = vmatpush1.bf16.msra.mxu0 0
    %1030 = vmatprep.subr.bf16.mxu0 0
    %1031 = vmatpush1.bf16.msra.mxu0 0
    %1032 = vmatprep.subr.bf16.mxu0 0
    %1033 = vmatpush1.bf16.msra.mxu0 0
    %1034 = vmatprep.subr.bf16.mxu0 0
    %1035 = vmatpush1.bf16.msra.mxu0 0
    %1036 = vmatprep.subr.bf16.mxu0 0
    %1037 = vmatpush1.bf16.msra.mxu0 0
    %1038 = vmatprep.subr.bf16.mxu0 0
    %1039 = vmatpush1.bf16.msra.mxu0 0
    %1040 = vmatprep.subr.bf16.mxu0 0
    %1041 = vmatpush1.bf16.msra.mxu0 0
    %1042 = vmatprep.subr.bf16.mxu0 0
    %1043 = vmatpush1.bf16.msra.mxu0 0
    %1044 = vmatprep.subr.bf16.mxu0 0
    %1045 = vmatpush1.bf16.msra.mxu0 0
    %1046 = vmatprep.subr.bf16.mxu0 0
    %1047 = vmatpush1.bf16.msra.mxu0 0
    %1048 = vmatprep.subr.bf16.mxu0 0
    %1049 = vmatpush1.bf16.msra.mxu0 0
    %1050 = vmatprep.subr.bf16.mxu0 0
    %1051 = vmatpush1.bf16.msra.mxu0 0
    %1052 = vmatprep.subr.bf16.mxu0 0
    %1053 = vmatpush1.bf16.msra.mxu0 0
    %1054 = vmatprep.subr.bf16.mxu0 0
    %1055 = vmatpush1.bf16.msra.mxu0 0
    %1056 = vmatprep.mubr.bf16.mxu0 0
    %1057 = vmatmul.mubr.bf16.gmra.mrb[0].mxu0 %v1022
    %v1058 = vpop.f32.mrb[0].mxu0
    %v1059 = vadd.f32 %v1007, %v1058
    %v1060 = vpop.f32.mrb[0].mxu0
    %v1061 = vpop.f32.mrb[0].mxu0
    %v1062 = vadd.f32 %v1007, %v1061
    %v1063 = vpop.f32.mrb[0].mxu0
    %1064 = vdwg.mxu0
    %v1065 = vmax.f32 %v1059, 0.0
    %v1066 = vmax.f32 %v1062, 0.0
    %v1067 = vpack.c.bf16 %v1066, %v1065
    %v1068 = vld [vmem:[%s12] sm:$0xf]
    %v1069 = vld [vmem:[%s12 + $0x4] sm:$0xf]
    %v1070 = vld [vmem:[%s12 + $0x8] sm:$0xf]
    %v1071 = vld [vmem:[%s12 + $0xc] sm:$0xf]
    %v1072 = vld [vmem:[%s12 + $0x10] sm:$0xf]
    %v1073 = vld [vmem:[%s12 + $0x14] sm:$0xf]
    %v1074 = vld [vmem:[%s12 + $0x18] sm:$0xf]
    %v1075 = vld [vmem:[%s12 + $0x1c] sm:$0xf]
    %v1076 = vld [vmem:[%s13] sm:$0x1]
    %v1078 = vlaneseq
    %v1079 = vshrl.u32 %v1078, 7
    %v1080 = vsub.s32 0, %v1079
    %v1081 = vrot.slane %v1076, %v1080
    %v1091 = vunpack.c.l.b16 %v1068
    %v1092 = vunpack.c.l.b16 %v1069
    %v1093 = vunpack.c.l.b16 %v1070
    %v1094 = vunpack.c.l.b16 %v1071
    %v1095 = vunpack.c.l.b16 %v1072
    %v1096 = vunpack.c.l.b16 %v1073
    %v1097 = vunpack.c.l.b16 %v1074
    %v1098 = vunpack.c.l.b16 %v1075
    %v1099 = vpack.c.b16 %v1092, %v1091
    %v1100 = vpack.c.b16 %v1094, %v1093
    %v1101 = vpack.c.b16 %v1096, %v1095
    %v1102 = vpack.c.b16 %v1098, %v1097
    %vm1107 = vcmask 523264
    %v1109 = vsel %vm1107, %v1067, 0
    %1111 = vmatprep.subr.bf16.mxu0 0
    %1112 = vmatpush1.bf16.msra.mxu0 %v1099
    %1113 = vmatprep.subr.bf16.mxu0 0
    %1114 = vmatpush1.bf16.msra.mxu0 %v1100
    %1115 = vmatprep.subr.bf16.mxu0 0
    %1116 = vmatpush1.bf16.msra.mxu0 %v1101
    %1117 = vmatprep.subr.bf16.mxu0 0
    %1118 = vmatpush1.bf16.msra.mxu0 %v1102
    %1119 = vmatprep.subr.bf16.mxu0 0
    %1120 = vmatpush1.bf16.msra.mxu0 0
    %1121 = vmatprep.subr.bf16.mxu0 0
    %1122 = vmatpush1.bf16.msra.mxu0 0
    %1123 = vmatprep.subr.bf16.mxu0 0
    %1124 = vmatpush1.bf16.msra.mxu0 0
    %1125 = vmatprep.subr.bf16.mxu0 0
    %1126 = vmatpush1.bf16.msra.mxu0 0
    %1127 = vmatprep.subr.bf16.mxu0 0
    %1128 = vmatpush1.bf16.msra.mxu0 0
    %1129 = vmatprep.subr.bf16.mxu0 0
    %1130 = vmatpush1.bf16.msra.mxu0 0
    %1131 = vmatprep.subr.bf16.mxu0 0
    %1132 = vmatpush1.bf16.msra.mxu0 0
    %1133 = vmatprep.subr.bf16.mxu0 0
    %1134 = vmatpush1.bf16.msra.mxu0 0
    %1135 = vmatprep.subr.bf16.mxu0 0
    %1136 = vmatpush1.bf16.msra.mxu0 0
    %1137 = vmatprep.subr.bf16.mxu0 0
    %1138 = vmatpush1.bf16.msra.mxu0 0
    %1139 = vmatprep.subr.bf16.mxu0 0
    %1140 = vmatpush1.bf16.msra.mxu0 0
    %1141 = vmatprep.subr.bf16.mxu0 0
    %1142 = vmatpush1.bf16.msra.mxu0 0
    %1143 = vmatprep.mubr.bf16.mxu0 0
    %1144 = vmatmul.mubr.bf16.gmra.mrb[0].mxu0 %v1109
    %v1145 = vpop.f32.mrb[0].mxu0
    %v1146 = vadd.f32 %v1081, %v1145
    %v1147 = vpop.f32.mrb[0].mxu0
    %v1148 = vpop.f32.mrb[0].mxu0
    %v1149 = vadd.f32 %v1081, %v1148
    %v1150 = vpop.f32.mrb[0].mxu0
    %1151 = vdwg.mxu0
    %v1152 = vadd.f32 %v937, %v1146
    %v1153 = vadd.f32 %v938, %v1149
    %1154 = vst.msk [vmem:[#allocation11] sm:$0xff] %vm115, %v1152
    %1155 = vst.msk [vmem:[#allocation11 + $0x8] sm:$0xff] %vm115, %v1153
    // Predicated region
    $region78: #{tpu_custom_call.1} parent=1 // pred_check
      _
    $region79: #{tpu_custom_call.1} parent=1 // pred_check_branch
      %1157 = sbr.rel (0) target = $region81
    $region80: #{tpu_custom_call.1} parent=1 // pred_region
      %s1159 = ssub.s32 256, 256
      %1160 = vsyncadd [#allocation4], %s1159
      %s1161 = sshll.u32 [#allocation11], 4
      %s1162 = int_to_ptr.vmem [resolvable:$true] %s1161
      %1167 = dma.vmem_to_hbm [thread:$0]  %s1162, 256, %s14, [#allocation4], 128, 128, 8
    $region81: #{tpu_custom_call.1} parent=1 // pred_fallthru
      _
    // Predicated region
    $region82: #{tpu_custom_call.1} parent=1 // pred_check
      _
    $region83: #{tpu_custom_call.1} parent=1 // pred_check_branch
      %1169 = sbr.rel (0) target = $region85
    $region84: #{tpu_custom_call.1} parent=1 // pred_region
      %1170 = dma.done [#allocation4], 256
    $region85: #{tpu_custom_call.1} parent=1 // pred_fallthru
      _
    %1171 = vsyncpa [#allocation3], 1
    %1172 = vsyncpa [#allocation6], 1
    %1173 = vsyncpa [#allocation9], 1
    %1174 = vsyncpa [#allocation4], 1

</llo_original>
